<compile_context>
chip_gen: v6e
topology: v6e:2x2x1
jax: 0.10.0
libtpu: 0.0.40
codegen_flags: <defaults>
</compile_context>

<pallas_src>
import math

import jax
import jax.numpy as jnp
from jax.experimental import pallas as pl
from jax.experimental.pallas import tpu as pltpu


_LAYER_DIMS = [(4, 32), (32, 64), (64, 128), (128, 256), (256, 512), (512, 1)]
_HIDDEN = [32, 64, 128, 256, 512]


def _round_up(v, m):
    return (v + m - 1) // m * m


def _meta_opt_kernel(packed_ref, n_ref,
                     w1_ref, b1_ref, a1_ref,
                     w2_ref, b2_ref, a2_ref,
                     w3_ref, b3_ref, a3_ref,
                     w4_ref, b4_ref, a4_ref,
                     w5_ref, b5_ref, a5_ref,
                     w6_ref, b6_ref,
                     out_ref):
    """Fused prep + whole MSE_Derv MLP for one batch tile; emits a partial sum."""
    tn = packed_ref.shape[0]

    # ---- fused prep (f32, exact): softmax over the 2 logits, one-hot row select ----
    p = packed_ref[...]                              # (TN, 8) f32: [x0, x1, y, 0...]
    x0 = p[:, 0:1]
    x1 = p[:, 1:2]
    yv = p[:, 2:3]                                   # y as f32 (exact small ints)
    m = jnp.maximum(x0, x1)
    e0 = jnp.exp(x0 - m)
    e1 = jnp.exp(x1 - m)
    s = e0 + e1
    sm0 = e0 / s                                     # softmax(x)[:, 0]
    sm1 = e1 / s                                     # softmax(x)[:, 1]

    # ---- layer 1 on the VPU (W1 already holds the *10 scaling), f32 ----
    w1 = w1_ref[...]                                 # (4, 32) f32, rows pre-scaled by 10
    h1 = (sm0 * w1[0:1, :] + sm1 * w1[1:2, :]
          + jnp.where(yv == 0.0, w1[2:3, :], 0.0)    # one_hot(y)*10 folded into W1 rows
          + jnp.where(yv == 1.0, w1[3:4, :], 0.0)
          + b1_ref[...])                             # (TN, 32) f32

    z = h1.astype(jnp.bfloat16)
    h = jnp.where(z > 0, z, a1_ref[...] * z)         # PReLU, bf16

    def layer(h_bf, w_ref, b_ref, a_ref):
        # bf16 MXU inputs, f32 accumulation; bias add + PReLU in bf16.
        acc = jnp.dot(h_bf, w_ref[...], preferred_element_type=jnp.float32)
        zz = acc.astype(jnp.bfloat16) + b_ref[...]
        return jnp.where(zz > 0, zz, a_ref[...] * zz)

    h = layer(h, w2_ref, b2_ref, a2_ref)             # (TN, 64)
    h = layer(h, w3_ref, b3_ref, a3_ref)             # (TN, 128)
    h = layer(h, w4_ref, b4_ref, a4_ref)             # (TN, 256)
    h = layer(h, w5_ref, b5_ref, a5_ref)             # (TN, 512) bf16

    # ---- final Linear(512, 1) on the MXU: W6 zero-padded to (512, 128), take col 0 ----
    zf = jnp.dot(h, w6_ref[...], preferred_element_type=jnp.float32)   # (TN, 128) f32
    zl = zf[:, 0:1] + b6_ref[...]                                      # (TN, 1) f32

    # Softplus (torch defaults: beta=1, threshold=20)
    sp = jnp.where(zl > 20.0, zl, jnp.log1p(jnp.exp(jnp.minimum(zl, 20.0))))

    # Mask rows past the true batch size, emit this tile's partial sum lane-dense.
    row = pl.program_id(0) * tn + jax.lax.broadcasted_iota(jnp.int32, (tn, 1), 0)
    partial = jnp.sum(jnp.where(row < n_ref[0], sp, 0.0))

    lane = jax.lax.broadcasted_iota(jnp.int32, (1, 1, 128), 2)
    out_ref[...] = jnp.where(lane == 0, partial, 0.0)


def init_params(key):
    """Deterministic PyTorch-style Linear init (U(-1/sqrt(fan_in), 1/sqrt(fan_in)))."""
    params = []
    for fan_in, fan_out in _LAYER_DIMS:
        key, kw, kb = jax.random.split(key, 3)
        bound = 1.0 / math.sqrt(fan_in)
        w = jax.random.uniform(kw, (fan_in, fan_out), jnp.float32, -bound, bound)
        b = jax.random.uniform(kb, (1, fan_out), jnp.float32, -bound, bound)
        params.append((w, b))
    alphas = jnp.full((5,), 0.25, jnp.float32)   # nn.PReLU() default init = 0.25
    return params, alphas


def meta_optimizer_forward(params, alphas, x, y):
    """Pallas-backed equivalent of MetaOptimizer.forward(x, y)."""
    n, c = x.shape
    assert c == 2, "MetaOptimizer's MSE_Derv(Linear(4, ...)) implies exactly 2 classes"

    # Batch tile: multiple of 8 sublanes, up to 1024 rows, chosen so num_tiles >= 2
    # when N allows it (keeps both v7x TensorCores busy via the 'parallel' axis).
    tn = max(8, min(1024, _round_up((n + 1) // 2, 8)))
    n_pad = _round_up(n, tn)
    num_tiles = n_pad // tn

    # Pack x and y into a single lane-padded input block (one DMA stream per tile).
    packed = jnp.zeros((n_pad, 8), jnp.float32)
    packed = packed.at[:n, 0:2].set(x.astype(jnp.float32))
    packed = packed.at[:n, 2].set(y.astype(jnp.float32))
    n_arr = jnp.array([n], jnp.int32)

    (w1, b1), (w2, b2), (w3, b3), (w4, b4), (w5, b5), (w6, b6) = params

    # Layer 1 stays f32 on the VPU; fold the x10 input scaling into its weights.
    w1s = (w1 * 10.0).astype(jnp.float32)                       # (4, 32)
    # Hidden layers: bf16 weights / biases / pre-broadcast PReLU alphas.
    w_bf = [w.astype(jnp.bfloat16) for w in (w2, w3, w4, w5)]
    b_bf = [b.astype(jnp.bfloat16) for b in (b2, b3, b4, b5)]
    a_bf = [jnp.broadcast_to(alphas[i], (1, d)).astype(jnp.bfloat16)
            for i, d in enumerate(_HIDDEN)]
    # Final projection: zero-pad W6 to a lane-dense (512, 128) bf16 MXU operand.
    w6_pad = jnp.zeros((512, 128), jnp.bfloat16).at[:, 0].set(
        w6[:, 0].astype(jnp.bfloat16))
    b6_f32 = b6.astype(jnp.float32)                             # (1, 1)

    operands = [packed, n_arr]
    in_specs = [
        pl.BlockSpec((tn, 8), lambda i: (i, 0)),
        pl.BlockSpec(memory_space=pltpu.MemorySpace.SMEM),      # true batch size
    ]
    resident = [w1s, b1, a_bf[0],
                w_bf[0], b_bf[0], a_bf[1],
                w_bf[1], b_bf[1], a_bf[2],
                w_bf[2], b_bf[2], a_bf[3],
                w_bf[3], b_bf[3], a_bf[4],
                w6_pad, b6_f32]
    for arr in resident:                                        # weights stay VMEM-resident
        operands.append(arr)
        in_specs.append(pl.BlockSpec(arr.shape, lambda i: (0, 0)))

    partials = pl.pallas_call(
        _meta_opt_kernel,
        grid=(num_tiles,),
        out_shape=jax.ShapeDtypeStruct((num_tiles, 1, 128), jnp.float32),
        in_specs=in_specs,
        out_specs=pl.BlockSpec((1, 1, 128), lambda i: (i, 0, 0)),
        compiler_params=pltpu.CompilerParams(
            dimension_semantics=("parallel",),
            vmem_limit_bytes=32 * 1024 * 1024),   # safe on v5e's 16 MiB scoped default
    )(*operands)

    # torch.mean over all N outputs (padded rows were masked in-kernel).
    return jnp.sum(partials) / jnp.float32(n)


def _reference_forward(params, alphas, x, y):
    """Plain-JAX reference mirroring the kernel's bf16 numerics."""
    (w1, b1), (w2, b2), (w3, b3), (w4, b4), (w5, b5), (w6, b6) = params
    sm = jax.nn.softmax(x.astype(jnp.float32), axis=1)
    onehot = jax.nn.one_hot(y, x.shape[1], dtype=jnp.float32)
    t = jnp.concatenate([sm * 10.0, onehot * 10.0], axis=1)
    z = (jnp.dot(t, w1) + b1).astype(jnp.bfloat16)
    h = jnp.where(z > 0, z, alphas[0].astype(jnp.bfloat16) * z)
    for i, (w, b) in enumerate([(w2, b2), (w3, b3), (w4, b4), (w5, b5)], start=1):
        acc = jnp.dot(h, w.astype(jnp.bfloat16), preferred_element_type=jnp.float32)
        z = acc.astype(jnp.bfloat16) + b.astype(jnp.bfloat16)
        h = jnp.where(z > 0, z, alphas[i].astype(jnp.bfloat16) * z)
    z = jnp.dot(h, w6.astype(jnp.bfloat16), preferred_element_type=jnp.float32) + b6
    z = jnp.where(z > 20.0, z, jnp.log1p(jnp.exp(jnp.minimum(z, 20.0))))
    return jnp.mean(z)


if __name__ == "__main__":
    key = jax.random.PRNGKey(0)
    kp, kx, ky = jax.random.split(key, 3)

    params, alphas = init_params(kp)

    # Module implies 2 classes (cat of softmax(x) and one_hot(y) feeds Linear(4, ...)).
    # N=24 exercises the multi-tile path (2 tiles) and the padded-row masking.
    N, C = 24, 2
    x = jax.random.normal(kx, (N, C), jnp.float32)
    y = jax.random.randint(ky, (N,), 0, C, jnp.int32)

    out = meta_optimizer_forward(params, alphas, x, y)
    out = jax.block_until_ready(out)

    ref = _reference_forward(params, alphas, x, y)
    assert out.shape == ()
    assert jnp.allclose(out, ref, rtol=5e-3, atol=1e-4), (out, ref)

    print("KERNEL_OK")
</pallas_src>

<mosaic_0001>
module attributes {stable_mosaic.version = 11 : i64} {
  func.func @_meta_opt_kernel(%arg0: i32, %arg1: memref<16x8xf32, #tpu.memory_space<vmem>>, %arg2: memref<1xi32, #tpu.memory_space<smem>>, %arg3: memref<4x32xf32, #tpu.memory_space<vmem>>, %arg4: memref<1x32xf32, #tpu.memory_space<vmem>>, %arg5: memref<1x32xbf16, #tpu.memory_space<vmem>>, %arg6: memref<32x64xbf16, #tpu.memory_space<vmem>>, %arg7: memref<1x64xbf16, #tpu.memory_space<vmem>>, %arg8: memref<1x64xbf16, #tpu.memory_space<vmem>>, %arg9: memref<64x128xbf16, #tpu.memory_space<vmem>>, %arg10: memref<1x128xbf16, #tpu.memory_space<vmem>>, %arg11: memref<1x128xbf16, #tpu.memory_space<vmem>>, %arg12: memref<128x256xbf16, #tpu.memory_space<vmem>>, %arg13: memref<1x256xbf16, #tpu.memory_space<vmem>>, %arg14: memref<1x256xbf16, #tpu.memory_space<vmem>>, %arg15: memref<256x512xbf16, #tpu.memory_space<vmem>>, %arg16: memref<1x512xbf16, #tpu.memory_space<vmem>>, %arg17: memref<1x512xbf16, #tpu.memory_space<vmem>>, %arg18: memref<512x128xbf16, #tpu.memory_space<vmem>>, %arg19: memref<1x1xf32, #tpu.memory_space<vmem>>, %arg20: memref<1x1x128xf32, #tpu.memory_space<vmem>>) attributes {dimension_semantics = [#tpu.dimension_semantics<parallel>], iteration_bounds = array<i64: 2>, scalar_prefetch = 0 : i64, scratch_operands = 0 : i64, tpu.core_type = #tpu.core_type<tc>, window_params = [{transform_indices = @transform_0, window_bounds = array<i64: 16, 8>}, {transform_indices = @transform_1, window_bounds = array<i64: 1>}, {pipeline_mode = #tpu.pipeline_mode<synchronous>, transform_indices = @transform_2, window_bounds = array<i64: 4, 32>}, {pipeline_mode = #tpu.pipeline_mode<synchronous>, transform_indices = @transform_3, window_bounds = array<i64: 1, 32>}, {pipeline_mode = #tpu.pipeline_mode<synchronous>, transform_indices = @transform_4, window_bounds = array<i64: 1, 32>}, {pipeline_mode = #tpu.pipeline_mode<synchronous>, transform_indices = @transform_5, window_bounds = array<i64: 32, 64>}, {pipeline_mode = #tpu.pipeline_mode<synchronous>, transform_indices = @transform_6, window_bounds = array<i64: 1, 64>}, {pipeline_mode = #tpu.pipeline_mode<synchronous>, transform_indices = @transform_7, window_bounds = array<i64: 1, 64>}, {pipeline_mode = #tpu.pipeline_mode<synchronous>, transform_indices = @transform_8, window_bounds = array<i64: 64, 128>}, {pipeline_mode = #tpu.pipeline_mode<synchronous>, transform_indices = @transform_9, window_bounds = array<i64: 1, 128>}, {pipeline_mode = #tpu.pipeline_mode<synchronous>, transform_indices = @transform_10, window_bounds = array<i64: 1, 128>}, {pipeline_mode = #tpu.pipeline_mode<synchronous>, transform_indices = @transform_11, window_bounds = array<i64: 128, 256>}, {pipeline_mode = #tpu.pipeline_mode<synchronous>, transform_indices = @transform_12, window_bounds = array<i64: 1, 256>}, {pipeline_mode = #tpu.pipeline_mode<synchronous>, transform_indices = @transform_13, window_bounds = array<i64: 1, 256>}, {pipeline_mode = #tpu.pipeline_mode<synchronous>, transform_indices = @transform_14, window_bounds = array<i64: 256, 512>}, {pipeline_mode = #tpu.pipeline_mode<synchronous>, transform_indices = @transform_15, window_bounds = array<i64: 1, 512>}, {pipeline_mode = #tpu.pipeline_mode<synchronous>, transform_indices = @transform_16, window_bounds = array<i64: 1, 512>}, {pipeline_mode = #tpu.pipeline_mode<synchronous>, transform_indices = @transform_17, window_bounds = array<i64: 512, 128>}, {pipeline_mode = #tpu.pipeline_mode<synchronous>, transform_indices = @transform_18, window_bounds = array<i64: 1, 1>}, {transform_indices = @transform_19, window_bounds = array<i64: 1, 1, 128>}]} {
    %c0 = arith.constant 0 : index
    %c0_0 = arith.constant 0 : index
    %0 = vector.load %arg1[%c0, %c0_0] : memref<16x8xf32, #tpu.memory_space<vmem>>, vector<16x8xf32>
    %1 = vector.extract_strided_slice %0 {offsets = [0, 0], sizes = [16, 1], strides = [1, 1]} : vector<16x8xf32> to vector<16x1xf32>
    %2 = vector.extract_strided_slice %0 {offsets = [0, 1], sizes = [16, 1], strides = [1, 1]} : vector<16x8xf32> to vector<16x1xf32>
    %3 = vector.extract_strided_slice %0 {offsets = [0, 2], sizes = [16, 1], strides = [1, 1]} : vector<16x8xf32> to vector<16x1xf32>
    %4 = arith.maximumf %1, %2 : vector<16x1xf32>
    %5 = arith.subf %1, %4 : vector<16x1xf32>
    %6 = math.exp %5 : vector<16x1xf32>
    %7 = arith.subf %2, %4 : vector<16x1xf32>
    %8 = math.exp %7 : vector<16x1xf32>
    %9 = arith.addf %6, %8 : vector<16x1xf32>
    %10 = arith.divf %6, %9 : vector<16x1xf32>
    %11 = arith.divf %8, %9 : vector<16x1xf32>
    %c0_1 = arith.constant 0 : index
    %c0_2 = arith.constant 0 : index
    %12 = vector.load %arg3[%c0_1, %c0_2] : memref<4x32xf32, #tpu.memory_space<vmem>>, vector<4x32xf32>
    %13 = vector.extract_strided_slice %12 {offsets = [0, 0], sizes = [1, 32], strides = [1, 1]} : vector<4x32xf32> to vector<1x32xf32>
    %14 = vector.broadcast %10 : vector<16x1xf32> to vector<16x32xf32>
    %15 = vector.broadcast %13 : vector<1x32xf32> to vector<16x32xf32>
    %16 = arith.mulf %14, %15 : vector<16x32xf32>
    %17 = vector.extract_strided_slice %12 {offsets = [1, 0], sizes = [1, 32], strides = [1, 1]} : vector<4x32xf32> to vector<1x32xf32>
    %18 = vector.broadcast %11 : vector<16x1xf32> to vector<16x32xf32>
    %19 = vector.broadcast %17 : vector<1x32xf32> to vector<16x32xf32>
    %20 = arith.mulf %18, %19 : vector<16x32xf32>
    %21 = arith.addf %16, %20 : vector<16x32xf32>
    %cst = arith.constant 0.000000e+00 : f32
    %22 = vector.broadcast %cst : f32 to vector<16x1xf32>
    %23 = arith.cmpf oeq, %3, %22 : vector<16x1xf32>
    %24 = vector.extract_strided_slice %12 {offsets = [2, 0], sizes = [1, 32], strides = [1, 1]} : vector<4x32xf32> to vector<1x32xf32>
    %cst_3 = arith.constant 0.000000e+00 : f32
    %25 = vector.shape_cast %23 : vector<16x1xi1> to vector<16x1xi1>
    %26 = vector.broadcast %25 : vector<16x1xi1> to vector<16x32xi1>
    %27 = vector.shape_cast %24 : vector<1x32xf32> to vector<1x32xf32>
    %28 = vector.broadcast %27 : vector<1x32xf32> to vector<16x32xf32>
    %29 = vector.broadcast %cst_3 : f32 to vector<16x32xf32>
    %30 = arith.select %26, %28, %29 : vector<16x32xi1>, vector<16x32xf32>
    %31 = arith.addf %21, %30 : vector<16x32xf32>
    %cst_4 = arith.constant 1.000000e+00 : f32
    %32 = vector.broadcast %cst_4 : f32 to vector<16x1xf32>
    %33 = arith.cmpf oeq, %3, %32 : vector<16x1xf32>
    %34 = vector.extract_strided_slice %12 {offsets = [3, 0], sizes = [1, 32], strides = [1, 1]} : vector<4x32xf32> to vector<1x32xf32>
    %cst_5 = arith.constant 0.000000e+00 : f32
    %35 = vector.shape_cast %33 : vector<16x1xi1> to vector<16x1xi1>
    %36 = vector.broadcast %35 : vector<16x1xi1> to vector<16x32xi1>
    %37 = vector.shape_cast %34 : vector<1x32xf32> to vector<1x32xf32>
    %38 = vector.broadcast %37 : vector<1x32xf32> to vector<16x32xf32>
    %39 = vector.broadcast %cst_5 : f32 to vector<16x32xf32>
    %40 = arith.select %36, %38, %39 : vector<16x32xi1>, vector<16x32xf32>
    %41 = arith.addf %31, %40 : vector<16x32xf32>
    %c0_6 = arith.constant 0 : index
    %c0_7 = arith.constant 0 : index
    %42 = vector.load %arg4[%c0_6, %c0_7] : memref<1x32xf32, #tpu.memory_space<vmem>>, vector<1x32xf32>
    %43 = vector.broadcast %42 : vector<1x32xf32> to vector<16x32xf32>
    %44 = arith.addf %41, %43 : vector<16x32xf32>
    %45 = arith.truncf %44 : vector<16x32xf32> to vector<16x32xbf16>
    %cst_8 = arith.constant 0.000000e+00 : bf16
    %46 = vector.broadcast %cst_8 : bf16 to vector<16x32xbf16>
    %47 = arith.cmpf ogt, %45, %46 : vector<16x32xbf16>
    %c0_9 = arith.constant 0 : index
    %c0_10 = arith.constant 0 : index
    %48 = vector.load %arg5[%c0_9, %c0_10] : memref<1x32xbf16, #tpu.memory_space<vmem>>, vector<1x32xbf16>
    %49 = vector.broadcast %48 : vector<1x32xbf16> to vector<16x32xbf16>
    %50 = arith.mulf %49, %45 : vector<16x32xbf16>
    %51 = arith.select %47, %45, %50 : vector<16x32xi1>, vector<16x32xbf16>
    %c0_11 = arith.constant 0 : index
    %c0_12 = arith.constant 0 : index
    %52 = vector.load %arg6[%c0_11, %c0_12] : memref<32x64xbf16, #tpu.memory_space<vmem>>, vector<32x64xbf16>
    %cst_13 = arith.constant dense<0.000000e+00> : vector<16x64xf32>
    %53 = tpu.matmul %51, %52, %cst_13 {dimension_numbers = #tpu.dot_dimension_numbers<[1], [0], [0], [1], [0, 0, 1, 1], [], []>} : vector<16x32xbf16>, vector<32x64xbf16>, vector<16x64xf32> -> vector<16x64xf32>
    %54 = arith.truncf %53 : vector<16x64xf32> to vector<16x64xbf16>
    %c0_14 = arith.constant 0 : index
    %c0_15 = arith.constant 0 : index
    %55 = vector.load %arg7[%c0_14, %c0_15] : memref<1x64xbf16, #tpu.memory_space<vmem>>, vector<1x64xbf16>
    %56 = vector.broadcast %55 : vector<1x64xbf16> to vector<16x64xbf16>
    %57 = arith.addf %54, %56 : vector<16x64xbf16>
    %cst_16 = arith.constant 0.000000e+00 : bf16
    %58 = vector.broadcast %cst_16 : bf16 to vector<16x64xbf16>
    %59 = arith.cmpf ogt, %57, %58 : vector<16x64xbf16>
    %c0_17 = arith.constant 0 : index
    %c0_18 = arith.constant 0 : index
    %60 = vector.load %arg8[%c0_17, %c0_18] : memref<1x64xbf16, #tpu.memory_space<vmem>>, vector<1x64xbf16>
    %61 = vector.broadcast %60 : vector<1x64xbf16> to vector<16x64xbf16>
    %62 = arith.mulf %61, %57 : vector<16x64xbf16>
    %63 = arith.select %59, %57, %62 : vector<16x64xi1>, vector<16x64xbf16>
    %c0_19 = arith.constant 0 : index
    %c0_20 = arith.constant 0 : index
    %64 = vector.load %arg9[%c0_19, %c0_20] : memref<64x128xbf16, #tpu.memory_space<vmem>>, vector<64x128xbf16>
    %cst_21 = arith.constant dense<0.000000e+00> : vector<16x128xf32>
    %65 = tpu.matmul %63, %64, %cst_21 {dimension_numbers = #tpu.dot_dimension_numbers<[1], [0], [0], [1], [0, 0, 1, 1], [], []>} : vector<16x64xbf16>, vector<64x128xbf16>, vector<16x128xf32> -> vector<16x128xf32>
    %66 = arith.truncf %65 : vector<16x128xf32> to vector<16x128xbf16>
    %c0_22 = arith.constant 0 : index
    %c0_23 = arith.constant 0 : index
    %67 = vector.load %arg10[%c0_22, %c0_23] : memref<1x128xbf16, #tpu.memory_space<vmem>>, vector<1x128xbf16>
    %68 = vector.broadcast %67 : vector<1x128xbf16> to vector<16x128xbf16>
    %69 = arith.addf %66, %68 : vector<16x128xbf16>
    %cst_24 = arith.constant 0.000000e+00 : bf16
    %70 = vector.broadcast %cst_24 : bf16 to vector<16x128xbf16>
    %71 = arith.cmpf ogt, %69, %70 : vector<16x128xbf16>
    %c0_25 = arith.constant 0 : index
    %c0_26 = arith.constant 0 : index
    %72 = vector.load %arg11[%c0_25, %c0_26] : memref<1x128xbf16, #tpu.memory_space<vmem>>, vector<1x128xbf16>
    %73 = vector.broadcast %72 : vector<1x128xbf16> to vector<16x128xbf16>
    %74 = arith.mulf %73, %69 : vector<16x128xbf16>
    %75 = arith.select %71, %69, %74 : vector<16x128xi1>, vector<16x128xbf16>
    %c0_27 = arith.constant 0 : index
    %c0_28 = arith.constant 0 : index
    %76 = vector.load %arg12[%c0_27, %c0_28] : memref<128x256xbf16, #tpu.memory_space<vmem>>, vector<128x256xbf16>
    %cst_29 = arith.constant dense<0.000000e+00> : vector<16x256xf32>
    %77 = tpu.matmul %75, %76, %cst_29 {dimension_numbers = #tpu.dot_dimension_numbers<[1], [0], [0], [1], [0, 0, 1, 1], [], []>} : vector<16x128xbf16>, vector<128x256xbf16>, vector<16x256xf32> -> vector<16x256xf32>
    %78 = arith.truncf %77 : vector<16x256xf32> to vector<16x256xbf16>
    %c0_30 = arith.constant 0 : index
    %c0_31 = arith.constant 0 : index
    %79 = vector.load %arg13[%c0_30, %c0_31] : memref<1x256xbf16, #tpu.memory_space<vmem>>, vector<1x256xbf16>
    %80 = vector.broadcast %79 : vector<1x256xbf16> to vector<16x256xbf16>
    %81 = arith.addf %78, %80 : vector<16x256xbf16>
    %cst_32 = arith.constant 0.000000e+00 : bf16
    %82 = vector.broadcast %cst_32 : bf16 to vector<16x256xbf16>
    %83 = arith.cmpf ogt, %81, %82 : vector<16x256xbf16>
    %c0_33 = arith.constant 0 : index
    %c0_34 = arith.constant 0 : index
    %84 = vector.load %arg14[%c0_33, %c0_34] : memref<1x256xbf16, #tpu.memory_space<vmem>>, vector<1x256xbf16>
    %85 = vector.broadcast %84 : vector<1x256xbf16> to vector<16x256xbf16>
    %86 = arith.mulf %85, %81 : vector<16x256xbf16>
    %87 = arith.select %83, %81, %86 : vector<16x256xi1>, vector<16x256xbf16>
    %c0_35 = arith.constant 0 : index
    %c0_36 = arith.constant 0 : index
    %88 = vector.load %arg15[%c0_35, %c0_36] : memref<256x512xbf16, #tpu.memory_space<vmem>>, vector<256x512xbf16>
    %cst_37 = arith.constant dense<0.000000e+00> : vector<16x512xf32>
    %89 = tpu.matmul %87, %88, %cst_37 {dimension_numbers = #tpu.dot_dimension_numbers<[1], [0], [0], [1], [0, 0, 1, 1], [], []>} : vector<16x256xbf16>, vector<256x512xbf16>, vector<16x512xf32> -> vector<16x512xf32>
    %90 = arith.truncf %89 : vector<16x512xf32> to vector<16x512xbf16>
    %c0_38 = arith.constant 0 : index
    %c0_39 = arith.constant 0 : index
    %91 = vector.load %arg16[%c0_38, %c0_39] : memref<1x512xbf16, #tpu.memory_space<vmem>>, vector<1x512xbf16>
    %92 = vector.broadcast %91 : vector<1x512xbf16> to vector<16x512xbf16>
    %93 = arith.addf %90, %92 : vector<16x512xbf16>
    %cst_40 = arith.constant 0.000000e+00 : bf16
    %94 = vector.broadcast %cst_40 : bf16 to vector<16x512xbf16>
    %95 = arith.cmpf ogt, %93, %94 : vector<16x512xbf16>
    %c0_41 = arith.constant 0 : index
    %c0_42 = arith.constant 0 : index
    %96 = vector.load %arg17[%c0_41, %c0_42] : memref<1x512xbf16, #tpu.memory_space<vmem>>, vector<1x512xbf16>
    %97 = vector.broadcast %96 : vector<1x512xbf16> to vector<16x512xbf16>
    %98 = arith.mulf %97, %93 : vector<16x512xbf16>
    %99 = arith.select %95, %93, %98 : vector<16x512xi1>, vector<16x512xbf16>
    %c0_43 = arith.constant 0 : index
    %c0_44 = arith.constant 0 : index
    %100 = vector.load %arg18[%c0_43, %c0_44] : memref<512x128xbf16, #tpu.memory_space<vmem>>, vector<512x128xbf16>
    %cst_45 = arith.constant dense<0.000000e+00> : vector<16x128xf32>
    %101 = tpu.matmul %99, %100, %cst_45 {dimension_numbers = #tpu.dot_dimension_numbers<[1], [0], [0], [1], [0, 0, 1, 1], [], []>} : vector<16x512xbf16>, vector<512x128xbf16>, vector<16x128xf32> -> vector<16x128xf32>
    %102 = vector.extract_strided_slice %101 {offsets = [0, 0], sizes = [16, 1], strides = [1, 1]} : vector<16x128xf32> to vector<16x1xf32>
    %c0_46 = arith.constant 0 : index
    %c0_47 = arith.constant 0 : index
    %103 = vector.load %arg19[%c0_46, %c0_47] : memref<1x1xf32, #tpu.memory_space<vmem>>, vector<1x1xf32>
    %104 = vector.broadcast %103 : vector<1x1xf32> to vector<16x1xf32>
    %105 = arith.addf %102, %104 : vector<16x1xf32>
    %cst_48 = arith.constant 2.000000e+01 : f32
    %106 = vector.broadcast %cst_48 : f32 to vector<16x1xf32>
    %107 = arith.cmpf ogt, %105, %106 : vector<16x1xf32>
    %cst_49 = arith.constant 2.000000e+01 : f32
    %108 = vector.broadcast %cst_49 : f32 to vector<16x1xf32>
    %109 = arith.minimumf %105, %108 : vector<16x1xf32>
    %110 = math.exp %109 : vector<16x1xf32>
    %111 = math.log1p %110 : vector<16x1xf32>
    %112 = arith.select %107, %105, %111 : vector<16x1xi1>, vector<16x1xf32>
    %c16_i32 = arith.constant 16 : i32
    %113 = arith.muli %arg0, %c16_i32 : i32
    %114 = tpu.iota {dimensions = array<i32: 0>} : vector<16x1xi32>
    %115 = vector.broadcast %113 : i32 to vector<16x1xi32>
    %116 = arith.addi %115, %114 : vector<16x1xi32>
    %c0_50 = arith.constant 0 : index
    %117 = memref.load %arg2[%c0_50] : memref<1xi32, #tpu.memory_space<smem>>
    %118 = vector.broadcast %117 : i32 to vector<16x1xi32>
    %119 = arith.cmpi slt, %116, %118 : vector<16x1xi32>
    %cst_51 = arith.constant 0.000000e+00 : f32
    %120 = vector.broadcast %cst_51 : f32 to vector<16x1xf32>
    %121 = arith.select %119, %112, %120 : vector<16x1xi1>, vector<16x1xf32>
    %122 = vector.shape_cast %121 : vector<16x1xf32> to vector<1x16x1xf32>
    %cst_52 = arith.constant dense<0.000000e+00> : vector<1xf32>
    %123 = vector.multi_reduction <add>, %122, %cst_52 [1, 2] : vector<1x16x1xf32> to vector<1xf32>
    %124 = vector.shape_cast %123 : vector<1xf32> to vector<1x1x1xf32>
    %125 = vector.extract %124[0, 0, 0] : f32 from vector<1x1x1xf32>
    %126 = tpu.iota {dimensions = array<i32: 2>} : vector<1x1x128xi32>
    %c0_i32 = arith.constant 0 : i32
    %127 = vector.broadcast %c0_i32 : i32 to vector<1x1x128xi32>
    %128 = arith.cmpi eq, %126, %127 : vector<1x1x128xi32>
    %cst_53 = arith.constant 0.000000e+00 : f32
    %129 = vector.broadcast %125 : f32 to vector<1x1x128xf32>
    %130 = vector.broadcast %cst_53 : f32 to vector<1x1x128xf32>
    %131 = arith.select %128, %129, %130 : vector<1x1x128xi1>, vector<1x1x128xf32>
    %c0_54 = arith.constant 0 : index
    %c0_55 = arith.constant 0 : index
    %c0_56 = arith.constant 0 : index
    %132 = vector.load %arg20[%c0_54, %c0_55, %c0_56] : memref<1x1x128xf32, #tpu.memory_space<vmem>>, vector<1x1x128xf32>
    tpu.vector_store %arg20[%c0_54, %c0_55, %c0_56], %131 {strides = array<i32>} : memref<1x1x128xf32, #tpu.memory_space<vmem>>, vector<1x1x128xf32>,
    return
  }
  func.func @transform_0(%arg0: i32) -> (i32, i32) {
    %c0_i32 = arith.constant 0 : i32
    %c0_i32_0 = arith.constant 0 : i32
    return %arg0, %c0_i32 : i32, i32
  }
  func.func @transform_1(%arg0: i32) -> i32 {
    %c0_i32 = arith.constant 0 : i32
    %c0_i32_0 = arith.constant 0 : i32
    return %c0_i32 : i32
  }
  func.func @transform_2(%arg0: i32) -> (i32, i32) {
    %c0_i32 = arith.constant 0 : i32
    %c0_i32_0 = arith.constant 0 : i32
    %c0_i32_1 = arith.constant 0 : i32
    return %c0_i32, %c0_i32_0 : i32, i32
  }
  func.func @transform_3(%arg0: i32) -> (i32, i32) {
    %c0_i32 = arith.constant 0 : i32
    %c0_i32_0 = arith.constant 0 : i32
    %c0_i32_1 = arith.constant 0 : i32
    return %c0_i32, %c0_i32_0 : i32, i32
  }
  func.func @transform_4(%arg0: i32) -> (i32, i32) {
    %c0_i32 = arith.constant 0 : i32
    %c0_i32_0 = arith.constant 0 : i32
    %c0_i32_1 = arith.constant 0 : i32
    return %c0_i32, %c0_i32_0 : i32, i32
  }
  func.func @transform_5(%arg0: i32) -> (i32, i32) {
    %c0_i32 = arith.constant 0 : i32
    %c0_i32_0 = arith.constant 0 : i32
    %c0_i32_1 = arith.constant 0 : i32
    return %c0_i32, %c0_i32_0 : i32, i32
  }
  func.func @transform_6(%arg0: i32) -> (i32, i32) {
    %c0_i32 = arith.constant 0 : i32
    %c0_i32_0 = arith.constant 0 : i32
    %c0_i32_1 = arith.constant 0 : i32
    return %c0_i32, %c0_i32_0 : i32, i32
  }
  func.func @transform_7(%arg0: i32) -> (i32, i32) {
    %c0_i32 = arith.constant 0 : i32
    %c0_i32_0 = arith.constant 0 : i32
    %c0_i32_1 = arith.constant 0 : i32
    return %c0_i32, %c0_i32_0 : i32, i32
  }
  func.func @transform_8(%arg0: i32) -> (i32, i32) {
    %c0_i32 = arith.constant 0 : i32
    %c0_i32_0 = arith.constant 0 : i32
    %c0_i32_1 = arith.constant 0 : i32
    return %c0_i32, %c0_i32_0 : i32, i32
  }
  func.func @transform_9(%arg0: i32) -> (i32, i32) {
    %c0_i32 = arith.constant 0 : i32
    %c0_i32_0 = arith.constant 0 : i32
    %c0_i32_1 = arith.constant 0 : i32
    return %c0_i32, %c0_i32_0 : i32, i32
  }
  func.func @transform_10(%arg0: i32) -> (i32, i32) {
    %c0_i32 = arith.constant 0 : i32
    %c0_i32_0 = arith.constant 0 : i32
    %c0_i32_1 = arith.constant 0 : i32
    return %c0_i32, %c0_i32_0 : i32, i32
  }
  func.func @transform_11(%arg0: i32) -> (i32, i32) {
    %c0_i32 = arith.constant 0 : i32
    %c0_i32_0 = arith.constant 0 : i32
    %c0_i32_1 = arith.constant 0 : i32
    return %c0_i32, %c0_i32_0 : i32, i32
  }
  func.func @transform_12(%arg0: i32) -> (i32, i32) {
    %c0_i32 = arith.constant 0 : i32
    %c0_i32_0 = arith.constant 0 : i32
    %c0_i32_1 = arith.constant 0 : i32
    return %c0_i32, %c0_i32_0 : i32, i32
  }
  func.func @transform_13(%arg0: i32) -> (i32, i32) {
    %c0_i32 = arith.constant 0 : i32
    %c0_i32_0 = arith.constant 0 : i32
    %c0_i32_1 = arith.constant 0 : i32
    return %c0_i32, %c0_i32_0 : i32, i32
  }
  func.func @transform_14(%arg0: i32) -> (i32, i32) {
    %c0_i32 = arith.constant 0 : i32
    %c0_i32_0 = arith.constant 0 : i32
    %c0_i32_1 = arith.constant 0 : i32
    return %c0_i32, %c0_i32_0 : i32, i32
  }
  func.func @transform_15(%arg0: i32) -> (i32, i32) {
    %c0_i32 = arith.constant 0 : i32
    %c0_i32_0 = arith.constant 0 : i32
    %c0_i32_1 = arith.constant 0 : i32
    return %c0_i32, %c0_i32_0 : i32, i32
  }
  func.func @transform_16(%arg0: i32) -> (i32, i32) {
    %c0_i32 = arith.constant 0 : i32
    %c0_i32_0 = arith.constant 0 : i32
    %c0_i32_1 = arith.constant 0 : i32
    return %c0_i32, %c0_i32_0 : i32, i32
  }
  func.func @transform_17(%arg0: i32) -> (i32, i32) {
    %c0_i32 = arith.constant 0 : i32
    %c0_i32_0 = arith.constant 0 : i32
    %c0_i32_1 = arith.constant 0 : i32
    return %c0_i32, %c0_i32_0 : i32, i32
  }
  func.func @transform_18(%arg0: i32) -> (i32, i32) {
    %c0_i32 = arith.constant 0 : i32
    %c0_i32_0 = arith.constant 0 : i32
    %c0_i32_1 = arith.constant 0 : i32
    return %c0_i32, %c0_i32_0 : i32, i32
  }
  func.func @transform_19(%arg0: i32) -> (i32, i32, i32) {
    %c0_i32 = arith.constant 0 : i32
    %c0_i32_0 = arith.constant 0 : i32
    %c0_i32_1 = arith.constant 0 : i32
    return %arg0, %c0_i32, %c0_i32_0 : i32, i32, i32
  }
}

</mosaic_0001>

<llo_original>
// kernel: tpu_custom_call.1
$region0: #{tpu_custom_call.1}
  #allocation0 [shape = 'u32[]', space=smem, size = 0x4, offset = 0x4, fixed_abs, tag = 'smem constant byte address 0x4 - core index']
  #allocation1 [shape = 'u32[144,128]{1,0:T(1,128)}', space=vmem, size = 0x12000, scoped, tag = 'internal scratch']
  #allocation2 [shape = 's32[1]{0:T(128)S(6)}', space=smem, size = 0x200, scoped, tag = 'scoped memory for tpu_custom_call.1']
  #allocation3 [shape = 'f32[1,1]{1,0:T(1,128)S(1)}', space=vmem, size = 0x200, scoped, tag = 'scoped memory for tpu_custom_call.1']
  %s0 = inlined_call_operand.vmem [shape: f32[32,8], index: 0, kind: input, shape index: {}]
  %s1 = inlined_call_operand.<no memory space> [shape: s32[1], index: 1, kind: input, shape index: {}]
  %s2 = inlined_call_operand.vmem [shape: f32[4,32], index: 2, kind: input, shape index: {}]
  %s3 = inlined_call_operand.hbm [shape: f32[1,32], index: 3, kind: input, shape index: {}]
  %s4 = inlined_call_operand.hbm [shape: bf16[1,32], index: 4, kind: input, shape index: {}]
  %s5 = inlined_call_operand.vmem [shape: bf16[32,64], index: 5, kind: input, shape index: {}]
  %s6 = inlined_call_operand.hbm [shape: bf16[1,64], index: 6, kind: input, shape index: {}]
  %s7 = inlined_call_operand.hbm [shape: bf16[1,64], index: 7, kind: input, shape index: {}]
  %s8 = inlined_call_operand.vmem [shape: bf16[64,128], index: 8, kind: input, shape index: {}]
  %s9 = inlined_call_operand.hbm [shape: bf16[1,128], index: 9, kind: input, shape index: {}]
  %s10 = inlined_call_operand.hbm [shape: bf16[1,128], index: 10, kind: input, shape index: {}]
  %s11 = inlined_call_operand.hbm [shape: bf16[128,256], index: 11, kind: input, shape index: {}]
  %s12 = inlined_call_operand.vmem [shape: bf16[1,256], index: 12, kind: input, shape index: {}]
  %s13 = inlined_call_operand.vmem [shape: bf16[1,256], index: 13, kind: input, shape index: {}]
  %s14 = inlined_call_operand.hbm [shape: bf16[256,512], index: 14, kind: input, shape index: {}]
  %s15 = inlined_call_operand.vmem [shape: bf16[1,512], index: 15, kind: input, shape index: {}]
  %s16 = inlined_call_operand.vmem [shape: bf16[1,512], index: 16, kind: input, shape index: {}]
  %s17 = inlined_call_operand.hbm [shape: bf16[512,128], index: 17, kind: input, shape index: {}]
  %s18 = inlined_call_operand.<no memory space> [shape: f32[1,1], index: 18, kind: input, shape index: {}]
  %s19 = inlined_call_operand.hbm [shape: f32[2,1,128], index: 19, kind: output, shape index: {}]
  %s20 = sld [smem:[#allocation0]]
  $region145: #{tpu_custom_call.1} parent=0
    _
  %s22 = ssub.s32 1, %s20
  %s23 = scalar_select 0, %s22, %s20
  %24 = sst [smem:[#allocation2]] %s1
  %v25 = vstv %s18
  %26 = vst [vmem:[#allocation3] sm:$0x1] %v25
  $region1: #{tpu_custom_call.1} parent=0
    #allocation4 [shape = 'u8[512]{0}', space=vmem, size = 0x400, scoped, tag = 'input window, operand 3, single buffered']
    #allocation5 [shape = 's32[2]{0}', space=sflag, size = 0x8, scoped, tag = 'scoped memory for tpu_custom_call.1']
    #allocation6 [shape = 's32[2]{0}', space=sflag, size = 0x8, scoped, tag = 'scoped memory for tpu_custom_call.1']
    #allocation7 [shape = 'u8[512]{0}', space=vmem, size = 0x400, scoped, tag = 'input window, operand 4, single buffered']
    #allocation8 [shape = 's32[1]{0}', space=sflag, size = 0x4, scoped, tag = 'scoped memory for tpu_custom_call.1']
    #allocation9 [shape = 'u8[512]{0}', space=vmem, size = 0x400, scoped, tag = 'input window, operand 6, single buffered']
    #allocation10 [shape = 'u8[512]{0}', space=vmem, size = 0x400, scoped, tag = 'input window, operand 7, single buffered']
    #allocation11 [shape = 's32[1]{0}', space=sflag, size = 0x4, scoped, tag = 'scoped memory for tpu_custom_call.1']
    #allocation12 [shape = 'u8[512]{0}', space=vmem, size = 0x400, scoped, tag = 'input window, operand 9, single buffered']
    #allocation13 [shape = 'u8[512]{0}', space=vmem, size = 0x400, scoped, tag = 'input window, operand 10, single buffered']
    #allocation14 [shape = 's32[1]{0}', space=sflag, size = 0x4, scoped, tag = 'scoped memory for tpu_custom_call.1']
    #allocation15 [shape = 'u8[65536]{0}', space=vmem, size = 0x10000, scoped, tag = 'input window, operand 11, single buffered']
    #allocation16 [shape = 'u8[262144]{0}', space=vmem, size = 0x40000, scoped, tag = 'input window, operand 14, single buffered']
    #allocation17 [shape = 's32[1]{0}', space=sflag, size = 0x4, scoped, tag = 'scoped memory for tpu_custom_call.1']
    #allocation18 [shape = 'u8[131072]{0}', space=vmem, size = 0x20000, scoped, tag = 'input window, operand 17, single buffered']
    #allocation19 [shape = 'u8[1024]{0}', space=vmem, size = 0x400, scoped, tag = 'output window, operand 0']
    %27 = vsyncpa [#allocation5], 0
    %28 = vsyncpa [#allocation8], 0
    %29 = vsyncpa [#allocation11], 0
    %30 = vsyncpa [#allocation14], 0
    %31 = vsyncpa [#allocation17], 0
    %32 = vsyncpa [#allocation6], 0
    %s33 = scalar_lea.sflag [#allocation6], 1
    %34 = vsyncpa %s33, 0
    loop: start=0, step=1, limit=4
    $region2: #{tpu_custom_call.1} parent=1 // loop_pre_header
      _
    $region3: #{tpu_custom_call.1} parent=1 // loop_header
      %s36 = sphi 0, %s40
      %p37 = scmp.ge.s32.totalorder %s36, 4
      %s46 = sphi 0, %s48
      %s49 = sphi 0, %s46
      %s50 = sphi 0, %s49
      %s66 = sphi 0, %s50
      %s70 = sphi 0, %s70
      %s72 = sphi 0, %s70
      %s73 = sphi 0, %s72
      %s87 = sphi 0, %s73
      %s91 = sphi 0, %s91
      %s93 = sphi 0, %s91
      %s94 = sphi 0, %s93
      %s108 = sphi 0, %s94
      %s112 = sphi 0, %s112
      %s114 = sphi 0, %s112
      %s115 = sphi 0, %s114
      %s129 = sphi 0, %s115
      %s133 = sphi 0, %s133
      %s135 = sphi 0, %s133
      %s136 = sphi 0, %s135
      %s150 = sphi 0, %s136
      %s154 = sphi 0, %s154
      %s156 = sphi 0, %s154
      %s157 = sphi 0, %s156
      %s171 = sphi 0, %s157
      %s175 = sphi 0, %s175
      %s177 = sphi 0, %s175
      %s178 = sphi 0, %s177
      %s192 = sphi 0, %s178
      %s196 = sphi 0, %s196
      %s198 = sphi 0, %s196
      %s199 = sphi 0, %s198
      %s213 = sphi 0, %s199
      %s217 = sphi 0, %s217
      %s219 = sphi 0, %s217
      %s220 = sphi 0, %s219
      %s234 = sphi 0, %s220
      %s238 = sphi 0, %s238
      %s240 = sphi 0, %s238
      %s241 = sphi 0, %s240
      %s255 = sphi 0, %s241
      %s259 = sphi 0, %s259
      %s261 = sphi 0, %s259
      %s262 = sphi 0, %s261
      %s276 = sphi 0, %s262
      %s280 = sphi 0, %s280
      %s282 = sphi 0, %s280
      %s283 = sphi 0, %s282
      %s297 = sphi 0, %s283
      %s301 = sphi 0, %s301
      %s303 = sphi 0, %s301
      %s304 = sphi 0, %s303
      %s318 = sphi 0, %s304
      %s322 = sphi 0, %s322
      %s324 = sphi 0, %s322
      %s325 = sphi 0, %s324
      %s339 = sphi 0, %s325
      %s343 = sphi 0, %s343
      %s345 = sphi 0, %s343
      %s346 = sphi 0, %s345
      %s360 = sphi 0, %s346
      %s364 = sphi 0, %s364
      %s366 = sphi 0, %s364
      %s367 = sphi 0, %s366
      %s381 = sphi 0, %s367
      %s385 = sphi 0, %s385
      %s387 = sphi 0, %s385
      %s388 = sphi 0, %s387
      %s402 = sphi 0, %s388
      %s406 = sphi 0, %s406
      %s408 = sphi 0, %s406
      %s409 = sphi 0, %s408
      %s423 = sphi 0, %s409
      %s427 = sphi 0, %s427
      %s429 = sphi 0, %s427
      %s430 = sphi 0, %s429
      %s444 = sphi 0, %s430
      %s450 = sphi 0, %s452
      %s453 = sphi 0, %s450
      %s454 = sphi 0, %s453
      %s470 = sphi 0, %s454
    $region4: #{tpu_custom_call.1} parent=1 // loop_header_branch
      %39 = sbr.rel (%p37) target = $region8
    $region5: #{tpu_custom_call.1} parent=1 // loop_body
      %s41 = ssub.s32 %s36, 1
      %s42 = ssub.s32 %s36, 2
      %s43 = sadd.s32 %s36, 1
      %s44 = ssub.s32 %s36, %s43
      %p45 = scmp.eq.s32.totalorder %s44, 0
      %s47 = sadd.s32 %s46, 1
      %s48 = scalar_select %p45, %s46, %s47
      %p51 = pneg %p45
      %p52 = scmp.eq.s32.totalorder %s36, 1
      %p53 = por %p51, %p52
      %p54 = scmp.ne.s32.totalorder %s46, %s49
      %p55 = scmp.eq.s32.totalorder %s36, 0
      %p56 = por %p54, %p55
      %p57 = scmp.ne.s32.totalorder %s46, %s49
      %p58 = scmp.eq.s32.totalorder %s41, 1
      %p59 = por %p57, %p58
      %p60 = scmp.ne.s32.totalorder %s49, %s50
      %p61 = scmp.eq.s32.totalorder %s41, 0
      %p62 = por %p60, %p61
      %p63 = scmp.ne.s32.totalorder %s49, %s50
      %p64 = scmp.eq.s32.totalorder %s42, 1
      %p65 = por %p63, %p64
      %p67 = scmp.ne.s32.totalorder %s50, %s66
      %p68 = scmp.eq.s32.totalorder %s42, 0
      %p69 = por %p67, %p68
      %s71 = sadd.s32 %s70, 1
      %p74 = scmp.eq.s32.totalorder %s36, 1
      %p75 = scmp.ne.s32.totalorder %s70, %s72
      %p76 = scmp.eq.s32.totalorder %s36, 0
      %p77 = por %p75, %p76
      %p78 = scmp.ne.s32.totalorder %s70, %s72
      %p79 = scmp.eq.s32.totalorder %s41, 1
      %p80 = por %p78, %p79
      %p81 = scmp.ne.s32.totalorder %s72, %s73
      %p82 = scmp.eq.s32.totalorder %s41, 0
      %p83 = por %p81, %p82
      %p84 = scmp.ne.s32.totalorder %s72, %s73
      %p85 = scmp.eq.s32.totalorder %s42, 1
      %p86 = por %p84, %p85
      %p88 = scmp.ne.s32.totalorder %s73, %s87
      %p89 = scmp.eq.s32.totalorder %s42, 0
      %p90 = por %p88, %p89
      %s92 = sadd.s32 %s91, 1
      %p95 = scmp.eq.s32.totalorder %s36, 1
      %p96 = scmp.ne.s32.totalorder %s91, %s93
      %p97 = scmp.eq.s32.totalorder %s36, 0
      %p98 = por %p96, %p97
      %p99 = scmp.ne.s32.totalorder %s91, %s93
      %p100 = scmp.eq.s32.totalorder %s41, 1
      %p101 = por %p99, %p100
      %p102 = scmp.ne.s32.totalorder %s93, %s94
      %p103 = scmp.eq.s32.totalorder %s41, 0
      %p104 = por %p102, %p103
      %p105 = scmp.ne.s32.totalorder %s93, %s94
      %p106 = scmp.eq.s32.totalorder %s42, 1
      %p107 = por %p105, %p106
      %p109 = scmp.ne.s32.totalorder %s94, %s108
      %p110 = scmp.eq.s32.totalorder %s42, 0
      %p111 = por %p109, %p110
      %s113 = sadd.s32 %s112, 1
      %p116 = scmp.eq.s32.totalorder %s36, 1
      %p117 = scmp.ne.s32.totalorder %s112, %s114
      %p118 = scmp.eq.s32.totalorder %s36, 0
      %p119 = por %p117, %p118
      %p120 = scmp.ne.s32.totalorder %s112, %s114
      %p121 = scmp.eq.s32.totalorder %s41, 1
      %p122 = por %p120, %p121
      %p123 = scmp.ne.s32.totalorder %s114, %s115
      %p124 = scmp.eq.s32.totalorder %s41, 0
      %p125 = por %p123, %p124
      %p126 = scmp.ne.s32.totalorder %s114, %s115
      %p127 = scmp.eq.s32.totalorder %s42, 1
      %p128 = por %p126, %p127
      %p130 = scmp.ne.s32.totalorder %s115, %s129
      %p131 = scmp.eq.s32.totalorder %s42, 0
      %p132 = por %p130, %p131
      %s134 = sadd.s32 %s133, 1
      %p137 = scmp.eq.s32.totalorder %s36, 1
      %p138 = scmp.ne.s32.totalorder %s133, %s135
      %p139 = scmp.eq.s32.totalorder %s36, 0
      %p140 = por %p138, %p139
      %p141 = scmp.ne.s32.totalorder %s133, %s135
      %p142 = scmp.eq.s32.totalorder %s41, 1
      %p143 = por %p141, %p142
      %p144 = scmp.ne.s32.totalorder %s135, %s136
      %p145 = scmp.eq.s32.totalorder %s41, 0
      %p146 = por %p144, %p145
      %p147 = scmp.ne.s32.totalorder %s135, %s136
      %p148 = scmp.eq.s32.totalorder %s42, 1
      %p149 = por %p147, %p148
      %p151 = scmp.ne.s32.totalorder %s136, %s150
      %p152 = scmp.eq.s32.totalorder %s42, 0
      %p153 = por %p151, %p152
      %s155 = sadd.s32 %s154, 1
      %p158 = scmp.eq.s32.totalorder %s36, 1
      %p159 = scmp.ne.s32.totalorder %s154, %s156
      %p160 = scmp.eq.s32.totalorder %s36, 0
      %p161 = por %p159, %p160
      %p162 = scmp.ne.s32.totalorder %s154, %s156
      %p163 = scmp.eq.s32.totalorder %s41, 1
      %p164 = por %p162, %p163
      %p165 = scmp.ne.s32.totalorder %s156, %s157
      %p166 = scmp.eq.s32.totalorder %s41, 0
      %p167 = por %p165, %p166
      %p168 = scmp.ne.s32.totalorder %s156, %s157
      %p169 = scmp.eq.s32.totalorder %s42, 1
      %p170 = por %p168, %p169
      %p172 = scmp.ne.s32.totalorder %s157, %s171
      %p173 = scmp.eq.s32.totalorder %s42, 0
      %p174 = por %p172, %p173
      %s176 = sadd.s32 %s175, 1
      %p179 = scmp.eq.s32.totalorder %s36, 1
      %p180 = scmp.ne.s32.totalorder %s175, %s177
      %p181 = scmp.eq.s32.totalorder %s36, 0
      %p182 = por %p180, %p181
      %p183 = scmp.ne.s32.totalorder %s175, %s177
      %p184 = scmp.eq.s32.totalorder %s41, 1
      %p185 = por %p183, %p184
      %p186 = scmp.ne.s32.totalorder %s177, %s178
      %p187 = scmp.eq.s32.totalorder %s41, 0
      %p188 = por %p186, %p187
      %p189 = scmp.ne.s32.totalorder %s177, %s178
      %p190 = scmp.eq.s32.totalorder %s42, 1
      %p191 = por %p189, %p190
      %p193 = scmp.ne.s32.totalorder %s178, %s192
      %p194 = scmp.eq.s32.totalorder %s42, 0
      %p195 = por %p193, %p194
      %s197 = sadd.s32 %s196, 1
      %p200 = scmp.eq.s32.totalorder %s36, 1
      %p201 = scmp.ne.s32.totalorder %s196, %s198
      %p202 = scmp.eq.s32.totalorder %s36, 0
      %p203 = por %p201, %p202
      %p204 = scmp.ne.s32.totalorder %s196, %s198
      %p205 = scmp.eq.s32.totalorder %s41, 1
      %p206 = por %p204, %p205
      %p207 = scmp.ne.s32.totalorder %s198, %s199
      %p208 = scmp.eq.s32.totalorder %s41, 0
      %p209 = por %p207, %p208
      %p210 = scmp.ne.s32.totalorder %s198, %s199
      %p211 = scmp.eq.s32.totalorder %s42, 1
      %p212 = por %p210, %p211
      %p214 = scmp.ne.s32.totalorder %s199, %s213
      %p215 = scmp.eq.s32.totalorder %s42, 0
      %p216 = por %p214, %p215
      %s218 = sadd.s32 %s217, 1
      %p221 = scmp.eq.s32.totalorder %s36, 1
      %p222 = scmp.ne.s32.totalorder %s217, %s219
      %p223 = scmp.eq.s32.totalorder %s36, 0
      %p224 = por %p222, %p223
      %p225 = scmp.ne.s32.totalorder %s217, %s219
      %p226 = scmp.eq.s32.totalorder %s41, 1
      %p227 = por %p225, %p226
      %p228 = scmp.ne.s32.totalorder %s219, %s220
      %p229 = scmp.eq.s32.totalorder %s41, 0
      %p230 = por %p228, %p229
      %p231 = scmp.ne.s32.totalorder %s219, %s220
      %p232 = scmp.eq.s32.totalorder %s42, 1
      %p233 = por %p231, %p232
      %p235 = scmp.ne.s32.totalorder %s220, %s234
      %p236 = scmp.eq.s32.totalorder %s42, 0
      %p237 = por %p235, %p236
      %s239 = sadd.s32 %s238, 1
      %p242 = scmp.eq.s32.totalorder %s36, 1
      %p243 = scmp.ne.s32.totalorder %s238, %s240
      %p244 = scmp.eq.s32.totalorder %s36, 0
      %p245 = por %p243, %p244
      %p246 = scmp.ne.s32.totalorder %s238, %s240
      %p247 = scmp.eq.s32.totalorder %s41, 1
      %p248 = por %p246, %p247
      %p249 = scmp.ne.s32.totalorder %s240, %s241
      %p250 = scmp.eq.s32.totalorder %s41, 0
      %p251 = por %p249, %p250
      %p252 = scmp.ne.s32.totalorder %s240, %s241
      %p253 = scmp.eq.s32.totalorder %s42, 1
      %p254 = por %p252, %p253
      %p256 = scmp.ne.s32.totalorder %s241, %s255
      %p257 = scmp.eq.s32.totalorder %s42, 0
      %p258 = por %p256, %p257
      %s260 = sadd.s32 %s259, 1
      %p263 = scmp.eq.s32.totalorder %s36, 1
      %p264 = scmp.ne.s32.totalorder %s259, %s261
      %p265 = scmp.eq.s32.totalorder %s36, 0
      %p266 = por %p264, %p265
      %p267 = scmp.ne.s32.totalorder %s259, %s261
      %p268 = scmp.eq.s32.totalorder %s41, 1
      %p269 = por %p267, %p268
      %p270 = scmp.ne.s32.totalorder %s261, %s262
      %p271 = scmp.eq.s32.totalorder %s41, 0
      %p272 = por %p270, %p271
      %p273 = scmp.ne.s32.totalorder %s261, %s262
      %p274 = scmp.eq.s32.totalorder %s42, 1
      %p275 = por %p273, %p274
      %p277 = scmp.ne.s32.totalorder %s262, %s276
      %p278 = scmp.eq.s32.totalorder %s42, 0
      %p279 = por %p277, %p278
      %s281 = sadd.s32 %s280, 1
      %p284 = scmp.eq.s32.totalorder %s36, 1
      %p285 = scmp.ne.s32.totalorder %s280, %s282
      %p286 = scmp.eq.s32.totalorder %s36, 0
      %p287 = por %p285, %p286
      %p288 = scmp.ne.s32.totalorder %s280, %s282
      %p289 = scmp.eq.s32.totalorder %s41, 1
      %p290 = por %p288, %p289
      %p291 = scmp.ne.s32.totalorder %s282, %s283
      %p292 = scmp.eq.s32.totalorder %s41, 0
      %p293 = por %p291, %p292
      %p294 = scmp.ne.s32.totalorder %s282, %s283
      %p295 = scmp.eq.s32.totalorder %s42, 1
      %p296 = por %p294, %p295
      %p298 = scmp.ne.s32.totalorder %s283, %s297
      %p299 = scmp.eq.s32.totalorder %s42, 0
      %p300 = por %p298, %p299
      %s302 = sadd.s32 %s301, 1
      %p305 = scmp.eq.s32.totalorder %s36, 1
      %p306 = scmp.ne.s32.totalorder %s301, %s303
      %p307 = scmp.eq.s32.totalorder %s36, 0
      %p308 = por %p306, %p307
      %p309 = scmp.ne.s32.totalorder %s301, %s303
      %p310 = scmp.eq.s32.totalorder %s41, 1
      %p311 = por %p309, %p310
      %p312 = scmp.ne.s32.totalorder %s303, %s304
      %p313 = scmp.eq.s32.totalorder %s41, 0
      %p314 = por %p312, %p313
      %p315 = scmp.ne.s32.totalorder %s303, %s304
      %p316 = scmp.eq.s32.totalorder %s42, 1
      %p317 = por %p315, %p316
      %p319 = scmp.ne.s32.totalorder %s304, %s318
      %p320 = scmp.eq.s32.totalorder %s42, 0
      %p321 = por %p319, %p320
      %s323 = sadd.s32 %s322, 1
      %p326 = scmp.eq.s32.totalorder %s36, 1
      %p327 = scmp.ne.s32.totalorder %s322, %s324
      %p328 = scmp.eq.s32.totalorder %s36, 0
      %p329 = por %p327, %p328
      %p330 = scmp.ne.s32.totalorder %s322, %s324
      %p331 = scmp.eq.s32.totalorder %s41, 1
      %p332 = por %p330, %p331
      %p333 = scmp.ne.s32.totalorder %s324, %s325
      %p334 = scmp.eq.s32.totalorder %s41, 0
      %p335 = por %p333, %p334
      %p336 = scmp.ne.s32.totalorder %s324, %s325
      %p337 = scmp.eq.s32.totalorder %s42, 1
      %p338 = por %p336, %p337
      %p340 = scmp.ne.s32.totalorder %s325, %s339
      %p341 = scmp.eq.s32.totalorder %s42, 0
      %p342 = por %p340, %p341
      %s344 = sadd.s32 %s343, 1
      %p347 = scmp.eq.s32.totalorder %s36, 1
      %p348 = scmp.ne.s32.totalorder %s343, %s345
      %p349 = scmp.eq.s32.totalorder %s36, 0
      %p350 = por %p348, %p349
      %p351 = scmp.ne.s32.totalorder %s343, %s345
      %p352 = scmp.eq.s32.totalorder %s41, 1
      %p353 = por %p351, %p352
      %p354 = scmp.ne.s32.totalorder %s345, %s346
      %p355 = scmp.eq.s32.totalorder %s41, 0
      %p356 = por %p354, %p355
      %p357 = scmp.ne.s32.totalorder %s345, %s346
      %p358 = scmp.eq.s32.totalorder %s42, 1
      %p359 = por %p357, %p358
      %p361 = scmp.ne.s32.totalorder %s346, %s360
      %p362 = scmp.eq.s32.totalorder %s42, 0
      %p363 = por %p361, %p362
      %s365 = sadd.s32 %s364, 1
      %p368 = scmp.eq.s32.totalorder %s36, 1
      %p369 = scmp.ne.s32.totalorder %s364, %s366
      %p370 = scmp.eq.s32.totalorder %s36, 0
      %p371 = por %p369, %p370
      %p372 = scmp.ne.s32.totalorder %s364, %s366
      %p373 = scmp.eq.s32.totalorder %s41, 1
      %p374 = por %p372, %p373
      %p375 = scmp.ne.s32.totalorder %s366, %s367
      %p376 = scmp.eq.s32.totalorder %s41, 0
      %p377 = por %p375, %p376
      %p378 = scmp.ne.s32.totalorder %s366, %s367
      %p379 = scmp.eq.s32.totalorder %s42, 1
      %p380 = por %p378, %p379
      %p382 = scmp.ne.s32.totalorder %s367, %s381
      %p383 = scmp.eq.s32.totalorder %s42, 0
      %p384 = por %p382, %p383
      %s386 = sadd.s32 %s385, 1
      %p389 = scmp.eq.s32.totalorder %s36, 1
      %p390 = scmp.ne.s32.totalorder %s385, %s387
      %p391 = scmp.eq.s32.totalorder %s36, 0
      %p392 = por %p390, %p391
      %p393 = scmp.ne.s32.totalorder %s385, %s387
      %p394 = scmp.eq.s32.totalorder %s41, 1
      %p395 = por %p393, %p394
      %p396 = scmp.ne.s32.totalorder %s387, %s388
      %p397 = scmp.eq.s32.totalorder %s41, 0
      %p398 = por %p396, %p397
      %p399 = scmp.ne.s32.totalorder %s387, %s388
      %p400 = scmp.eq.s32.totalorder %s42, 1
      %p401 = por %p399, %p400
      %p403 = scmp.ne.s32.totalorder %s388, %s402
      %p404 = scmp.eq.s32.totalorder %s42, 0
      %p405 = por %p403, %p404
      %s407 = sadd.s32 %s406, 1
      %p410 = scmp.eq.s32.totalorder %s36, 1
      %p411 = scmp.ne.s32.totalorder %s406, %s408
      %p412 = scmp.eq.s32.totalorder %s36, 0
      %p413 = por %p411, %p412
      %p414 = scmp.ne.s32.totalorder %s406, %s408
      %p415 = scmp.eq.s32.totalorder %s41, 1
      %p416 = por %p414, %p415
      %p417 = scmp.ne.s32.totalorder %s408, %s409
      %p418 = scmp.eq.s32.totalorder %s41, 0
      %p419 = por %p417, %p418
      %p420 = scmp.ne.s32.totalorder %s408, %s409
      %p421 = scmp.eq.s32.totalorder %s42, 1
      %p422 = por %p420, %p421
      %p424 = scmp.ne.s32.totalorder %s409, %s423
      %p425 = scmp.eq.s32.totalorder %s42, 0
      %p426 = por %p424, %p425
      %s428 = sadd.s32 %s427, 1
      %p431 = scmp.eq.s32.totalorder %s36, 1
      %p432 = scmp.ne.s32.totalorder %s427, %s429
      %p433 = scmp.eq.s32.totalorder %s36, 0
      %p434 = por %p432, %p433
      %p435 = scmp.ne.s32.totalorder %s427, %s429
      %p436 = scmp.eq.s32.totalorder %s41, 1
      %p437 = por %p435, %p436
      %p438 = scmp.ne.s32.totalorder %s429, %s430
      %p439 = scmp.eq.s32.totalorder %s41, 0
      %p440 = por %p438, %p439
      %p441 = scmp.ne.s32.totalorder %s429, %s430
      %p442 = scmp.eq.s32.totalorder %s42, 1
      %p443 = por %p441, %p442
      %p445 = scmp.ne.s32.totalorder %s430, %s444
      %p446 = scmp.eq.s32.totalorder %s42, 0
      %p447 = por %p445, %p446
      %s448 = ssub.s32 %s36, %s43
      %p449 = scmp.eq.s32.totalorder %s448, 0
      %s451 = sadd.s32 %s450, 1
      %s452 = scalar_select %p449, %s450, %s451
      %p455 = pneg %p449
      %p456 = scmp.eq.s32.totalorder %s36, 1
      %p457 = por %p455, %p456
      %p458 = scmp.ne.s32.totalorder %s450, %s453
      %p459 = scmp.eq.s32.totalorder %s36, 0
      %p460 = por %p458, %p459
      %p461 = scmp.ne.s32.totalorder %s450, %s453
      %p462 = scmp.eq.s32.totalorder %s41, 1
      %p463 = por %p461, %p462
      %p464 = scmp.ne.s32.totalorder %s453, %s454
      %p465 = scmp.eq.s32.totalorder %s41, 0
      %p466 = por %p464, %p465
      %p467 = scmp.ne.s32.totalorder %s453, %s454
      %p468 = scmp.eq.s32.totalorder %s42, 1
      %p469 = por %p467, %p468
      %p471 = scmp.ne.s32.totalorder %s454, %s470
      %p472 = scmp.eq.s32.totalorder %s42, 0
      %p473 = por %p471, %p472
      %p474 = scmp.le.s32.totalorder 1, %s36
      %p475 = scmp.lt.s32.totalorder %s36, 3
      %p476 = pnand %p474, %p475
      %p477 = pneg %p476
      // Predicated region
      $region9: #{tpu_custom_call.1} parent=5 // pred_check
        _
      $region10: #{tpu_custom_call.1} parent=5 // pred_check_branch
        %479 = sbr.rel (%p476) target = $region12
      $region11: #{tpu_custom_call.1} parent=5 // pred_region
        %s480 = ssub.s32 %s36, 1
        // Predicated region
        $region13: #{tpu_custom_call.1} parent=11 // pred_check
          %p481 = pneg %p83
        $region14: #{tpu_custom_call.1} parent=11 // pred_check_branch
          %483 = sbr.rel (%p481) target = $region16
        $region15: #{tpu_custom_call.1} parent=11 // pred_region
          _
        $region16: #{tpu_custom_call.1} parent=11 // pred_fallthru
          _
        // Predicated region
        $region17: #{tpu_custom_call.1} parent=11 // pred_check
          %p484 = pneg %p104
        $region18: #{tpu_custom_call.1} parent=11 // pred_check_branch
          %486 = sbr.rel (%p484) target = $region20
        $region19: #{tpu_custom_call.1} parent=11 // pred_region
          _
        $region20: #{tpu_custom_call.1} parent=11 // pred_fallthru
          _
        // Predicated region
        $region21: #{tpu_custom_call.1} parent=11 // pred_check
          %p487 = pneg %p125
        $region22: #{tpu_custom_call.1} parent=11 // pred_check_branch
          %489 = sbr.rel (%p487) target = $region24
        $region23: #{tpu_custom_call.1} parent=11 // pred_region
          %s491 = ssub.s32 16, 16
          %492 = vsyncadd [#allocation5], %s491
          %s494 = sshll.u32 [#allocation4], 4
          %s495 = int_to_ptr.vmem [resolvable:$true] %s494
          %497 = dma.hbm_to_vmem [thread:$0]  %s3, 16, %s495, [#allocation5]
        $region24: #{tpu_custom_call.1} parent=11 // pred_fallthru
          _
        // Predicated region
        $region25: #{tpu_custom_call.1} parent=11 // pred_check
          %p498 = pneg %p146
        $region26: #{tpu_custom_call.1} parent=11 // pred_check_branch
          %500 = sbr.rel (%p498) target = $region28
        $region27: #{tpu_custom_call.1} parent=11 // pred_region
          %s502 = ssub.s32 16, 16
          %503 = vsyncadd [#allocation8], %s502
          %s505 = sshll.u32 [#allocation7], 4
          %s506 = int_to_ptr.vmem [resolvable:$true] %s505
          %508 = dma.hbm_to_vmem [thread:$0]  %s4, 16, %s506, [#allocation8]
        $region28: #{tpu_custom_call.1} parent=11 // pred_fallthru
          _
        // Predicated region
        $region29: #{tpu_custom_call.1} parent=11 // pred_check
          %p509 = pneg %p167
        $region30: #{tpu_custom_call.1} parent=11 // pred_check_branch
          %511 = sbr.rel (%p509) target = $region32
        $region31: #{tpu_custom_call.1} parent=11 // pred_region
          _
        $region32: #{tpu_custom_call.1} parent=11 // pred_fallthru
          _
        // Predicated region
        $region33: #{tpu_custom_call.1} parent=11 // pred_check
          %p512 = pneg %p188
        $region34: #{tpu_custom_call.1} parent=11 // pred_check_branch
          %514 = sbr.rel (%p512) target = $region36
        $region35: #{tpu_custom_call.1} parent=11 // pred_region
          %s516 = ssub.s32 16, 16
          %517 = vsyncadd [#allocation8], %s516
          %s519 = sshll.u32 [#allocation9], 4
          %s520 = int_to_ptr.vmem [resolvable:$true] %s519
          %522 = dma.hbm_to_vmem [thread:$0]  %s6, 16, %s520, [#allocation8]
        $region36: #{tpu_custom_call.1} parent=11 // pred_fallthru
          _
        // Predicated region
        $region37: #{tpu_custom_call.1} parent=11 // pred_check
          %p523 = pneg %p209
        $region38: #{tpu_custom_call.1} parent=11 // pred_check_branch
          %525 = sbr.rel (%p523) target = $region40
        $region39: #{tpu_custom_call.1} parent=11 // pred_region
          %s527 = ssub.s32 16, 16
          %528 = vsyncadd [#allocation11], %s527
          %s530 = sshll.u32 [#allocation10], 4
          %s531 = int_to_ptr.vmem [resolvable:$true] %s530
          %533 = dma.hbm_to_vmem [thread:$0]  %s7, 16, %s531, [#allocation11]
        $region40: #{tpu_custom_call.1} parent=11 // pred_fallthru
          _
        // Predicated region
        $region41: #{tpu_custom_call.1} parent=11 // pred_check
          %p534 = pneg %p230
        $region42: #{tpu_custom_call.1} parent=11 // pred_check_branch
          %536 = sbr.rel (%p534) target = $region44
        $region43: #{tpu_custom_call.1} parent=11 // pred_region
          _
        $region44: #{tpu_custom_call.1} parent=11 // pred_fallthru
          _
        // Predicated region
        $region45: #{tpu_custom_call.1} parent=11 // pred_check
          %p537 = pneg %p251
        $region46: #{tpu_custom_call.1} parent=11 // pred_check_branch
          %539 = sbr.rel (%p537) target = $region48
        $region47: #{tpu_custom_call.1} parent=11 // pred_region
          %s541 = ssub.s32 16, 16
          %542 = vsyncadd [#allocation11], %s541
          %s544 = sshll.u32 [#allocation12], 4
          %s545 = int_to_ptr.vmem [resolvable:$true] %s544
          %547 = dma.hbm_to_vmem [thread:$0]  %s9, 16, %s545, [#allocation11]
        $region48: #{tpu_custom_call.1} parent=11 // pred_fallthru
          _
        // Predicated region
        $region49: #{tpu_custom_call.1} parent=11 // pred_check
          %p548 = pneg %p272
        $region50: #{tpu_custom_call.1} parent=11 // pred_check_branch
          %550 = sbr.rel (%p548) target = $region52
        $region51: #{tpu_custom_call.1} parent=11 // pred_region
          %s552 = ssub.s32 16, 16
          %553 = vsyncadd [#allocation14], %s552
          %s555 = sshll.u32 [#allocation13], 4
          %s556 = int_to_ptr.vmem [resolvable:$true] %s555
          %558 = dma.hbm_to_vmem [thread:$0]  %s10, 16, %s556, [#allocation14]
        $region52: #{tpu_custom_call.1} parent=11 // pred_fallthru
          _
        // Predicated region
        $region53: #{tpu_custom_call.1} parent=11 // pred_check
          %p559 = pneg %p293
        $region54: #{tpu_custom_call.1} parent=11 // pred_check_branch
          %561 = sbr.rel (%p559) target = $region56
        $region55: #{tpu_custom_call.1} parent=11 // pred_region
          %s563 = ssub.s32 2048, 2048
          %564 = vsyncadd [#allocation14], %s563
          %s565 = sshll.u32 [#allocation15], 4
          %s566 = int_to_ptr.vmem [resolvable:$true] %s565
          %571 = dma.hbm_to_vmem [thread:$0]  %s11, 2048, %s566, [#allocation14], 128, 128, 8
        $region56: #{tpu_custom_call.1} parent=11 // pred_fallthru
          _
        // Predicated region
        $region57: #{tpu_custom_call.1} parent=11 // pred_check
          %p572 = pneg %p314
        $region58: #{tpu_custom_call.1} parent=11 // pred_check_branch
          %574 = sbr.rel (%p572) target = $region60
        $region59: #{tpu_custom_call.1} parent=11 // pred_region
          _
        $region60: #{tpu_custom_call.1} parent=11 // pred_fallthru
          _
        // Predicated region
        $region61: #{tpu_custom_call.1} parent=11 // pred_check
          %p575 = pneg %p335
        $region62: #{tpu_custom_call.1} parent=11 // pred_check_branch
          %577 = sbr.rel (%p575) target = $region64
        $region63: #{tpu_custom_call.1} parent=11 // pred_region
          _
        $region64: #{tpu_custom_call.1} parent=11 // pred_fallthru
          _
        // Predicated region
        $region65: #{tpu_custom_call.1} parent=11 // pred_check
          %p578 = pneg %p356
        $region66: #{tpu_custom_call.1} parent=11 // pred_check_branch
          %580 = sbr.rel (%p578) target = $region68
        $region67: #{tpu_custom_call.1} parent=11 // pred_region
          %s582 = ssub.s32 8192, 8192
          %583 = vsyncadd [#allocation17], %s582
          %s584 = sshll.u32 [#allocation16], 4
          %s585 = int_to_ptr.vmem [resolvable:$true] %s584
          %590 = dma.hbm_to_vmem [thread:$0]  %s14, 8192, %s585, [#allocation17], 256, 256, 16
        $region68: #{tpu_custom_call.1} parent=11 // pred_fallthru
          _
        // Predicated region
        $region69: #{tpu_custom_call.1} parent=11 // pred_check
          %p591 = pneg %p377
        $region70: #{tpu_custom_call.1} parent=11 // pred_check_branch
          %593 = sbr.rel (%p591) target = $region72
        $region71: #{tpu_custom_call.1} parent=11 // pred_region
          _
        $region72: #{tpu_custom_call.1} parent=11 // pred_fallthru
          _
        // Predicated region
        $region73: #{tpu_custom_call.1} parent=11 // pred_check
          %p594 = pneg %p398
        $region74: #{tpu_custom_call.1} parent=11 // pred_check_branch
          %596 = sbr.rel (%p594) target = $region76
        $region75: #{tpu_custom_call.1} parent=11 // pred_region
          _
        $region76: #{tpu_custom_call.1} parent=11 // pred_fallthru
          _
        // Predicated region
        $region77: #{tpu_custom_call.1} parent=11 // pred_check
          %p597 = pneg %p419
        $region78: #{tpu_custom_call.1} parent=11 // pred_check_branch
          %599 = sbr.rel (%p597) target = $region80
        $region79: #{tpu_custom_call.1} parent=11 // pred_region
          %s601 = ssub.s32 4096, 4096
          %602 = vsyncadd [#allocation17], %s601
          %s603 = sshll.u32 [#allocation18], 4
          %s604 = int_to_ptr.vmem [resolvable:$true] %s603
          %609 = dma.hbm_to_vmem [thread:$0]  %s17, 4096, %s604, [#allocation17], 64, 64, 4
        $region80: #{tpu_custom_call.1} parent=11 // pred_fallthru
          _
        // Predicated region
        $region81: #{tpu_custom_call.1} parent=11 // pred_check
          %p610 = pneg %p440
        $region82: #{tpu_custom_call.1} parent=11 // pred_check_branch
          %612 = sbr.rel (%p610) target = $region84
        $region83: #{tpu_custom_call.1} parent=11 // pred_region
          _
        $region84: #{tpu_custom_call.1} parent=11 // pred_fallthru
          _
      $region12: #{tpu_custom_call.1} parent=5 // pred_fallthru
        _
      %p613 = scmp.lt.s32.totalorder %s36, 2
      // Predicated region
      $region85: #{tpu_custom_call.1} parent=5 // pred_check
        %p614 = pneg %p613
      $region86: #{tpu_custom_call.1} parent=5 // pred_check_branch
        %616 = sbr.rel (%p614) target = $region88
      $region87: #{tpu_custom_call.1} parent=5 // pred_region
        // Predicated region
        $region89: #{tpu_custom_call.1} parent=87 // pred_check
          %p617 = pneg %p56
        $region90: #{tpu_custom_call.1} parent=87 // pred_check_branch
          %619 = sbr.rel (%p617) target = $region92
        $region91: #{tpu_custom_call.1} parent=87 // pred_region
          %s620 = smul.u32 2, %s36
          %p621 = scmp.lt.s32.totalorder %s620, 3
          %s622 = scalar_select %p621, %s620, 3
          %s623 = smul.addr %s622, 8
          %s624 = scalar_lea.vmem %s0, %s623
          %s625 = smul.u32 2, %s36
        $region92: #{tpu_custom_call.1} parent=87 // pred_fallthru
          _
      $region88: #{tpu_custom_call.1} parent=5 // pred_fallthru
        _
      %p626 = scmp.le.s32.totalorder 1, %s36
      %p627 = scmp.lt.s32.totalorder %s36, 3
      %p628 = pnand %p626, %p627
      %p629 = pneg %p628
      // Predicated region
      $region93: #{tpu_custom_call.1} parent=5 // pred_check
        _
      $region94: #{tpu_custom_call.1} parent=5 // pred_check_branch
        %631 = sbr.rel (%p628) target = $region96
      $region95: #{tpu_custom_call.1} parent=5 // pred_region
        %s632 = ssub.s32 %s36, 1
        // Predicated region
        $region97: #{tpu_custom_call.1} parent=95 // pred_check
          %p633 = pneg %p125
        $region98: #{tpu_custom_call.1} parent=95 // pred_check_branch
          %635 = sbr.rel (%p633) target = $region100
        $region99: #{tpu_custom_call.1} parent=95 // pred_region
          %636 = dma.done [#allocation5], 16
        $region100: #{tpu_custom_call.1} parent=95 // pred_fallthru
          _
        // Predicated region
        $region101: #{tpu_custom_call.1} parent=95 // pred_check
          %p637 = pneg %p146
        $region102: #{tpu_custom_call.1} parent=95 // pred_check_branch
          %639 = sbr.rel (%p637) target = $region104
        $region103: #{tpu_custom_call.1} parent=95 // pred_region
          %640 = dma.done [#allocation8], 16
        $region104: #{tpu_custom_call.1} parent=95 // pred_fallthru
          _
        // Predicated region
        $region105: #{tpu_custom_call.1} parent=95 // pred_check
          %p641 = pneg %p188
        $region106: #{tpu_custom_call.1} parent=95 // pred_check_branch
          %643 = sbr.rel (%p641) target = $region108
        $region107: #{tpu_custom_call.1} parent=95 // pred_region
          %644 = dma.done [#allocation8], 16
        $region108: #{tpu_custom_call.1} parent=95 // pred_fallthru
          _
        // Predicated region
        $region109: #{tpu_custom_call.1} parent=95 // pred_check
          %p645 = pneg %p209
        $region110: #{tpu_custom_call.1} parent=95 // pred_check_branch
          %647 = sbr.rel (%p645) target = $region112
        $region111: #{tpu_custom_call.1} parent=95 // pred_region
          %648 = dma.done [#allocation11], 16
        $region112: #{tpu_custom_call.1} parent=95 // pred_fallthru
          _
        // Predicated region
        $region113: #{tpu_custom_call.1} parent=95 // pred_check
          %p649 = pneg %p251
        $region114: #{tpu_custom_call.1} parent=95 // pred_check_branch
          %651 = sbr.rel (%p649) target = $region116
        $region115: #{tpu_custom_call.1} parent=95 // pred_region
          %652 = dma.done [#allocation11], 16
        $region116: #{tpu_custom_call.1} parent=95 // pred_fallthru
          _
        // Predicated region
        $region117: #{tpu_custom_call.1} parent=95 // pred_check
          %p653 = pneg %p272
        $region118: #{tpu_custom_call.1} parent=95 // pred_check_branch
          %655 = sbr.rel (%p653) target = $region120
        $region119: #{tpu_custom_call.1} parent=95 // pred_region
          %656 = dma.done [#allocation14], 16
        $region120: #{tpu_custom_call.1} parent=95 // pred_fallthru
          _
        // Predicated region
        $region121: #{tpu_custom_call.1} parent=95 // pred_check
          %p657 = pneg %p293
        $region122: #{tpu_custom_call.1} parent=95 // pred_check_branch
          %659 = sbr.rel (%p657) target = $region124
        $region123: #{tpu_custom_call.1} parent=95 // pred_region
          %660 = dma.done [#allocation14], 2048
        $region124: #{tpu_custom_call.1} parent=95 // pred_fallthru
          _
        // Predicated region
        $region125: #{tpu_custom_call.1} parent=95 // pred_check
          %p661 = pneg %p356
        $region126: #{tpu_custom_call.1} parent=95 // pred_check_branch
          %663 = sbr.rel (%p661) target = $region128
        $region127: #{tpu_custom_call.1} parent=95 // pred_region
          %664 = dma.done [#allocation17], 8192
        $region128: #{tpu_custom_call.1} parent=95 // pred_fallthru
          _
        // Predicated region
        $region129: #{tpu_custom_call.1} parent=95 // pred_check
          %p665 = pneg %p419
        $region130: #{tpu_custom_call.1} parent=95 // pred_check_branch
          %667 = sbr.rel (%p665) target = $region132
        $region131: #{tpu_custom_call.1} parent=95 // pred_region
          %668 = dma.done [#allocation17], 4096
        $region132: #{tpu_custom_call.1} parent=95 // pred_fallthru
          _
        %s669 = smul.u32 2, %s41
        %p670 = scmp.lt.s32.totalorder %s669, 3
        %s671 = scalar_select %p670, %s669, 3
        %s672 = smul.addr %s671, 8
        %s673 = scalar_lea.vmem %s0, %s672
        %p674 = pneg %p62
        %p675 = pneg %p59
        %p676 = pneg %p83
        %p677 = pneg %p80
        %p678 = pneg %p104
        %p679 = pneg %p101
        %p680 = pneg %p125
        %p681 = pneg %p122
        %p682 = pneg %p146
        %p683 = pneg %p143
        %p684 = pneg %p167
        %p685 = pneg %p164
        %p686 = pneg %p188
        %p687 = pneg %p185
        %p688 = pneg %p209
        %p689 = pneg %p206
        %p690 = pneg %p230
        %p691 = pneg %p227
        %p692 = pneg %p251
        %p693 = pneg %p248
        %p694 = pneg %p272
        %p695 = pneg %p269
        %p696 = pneg %p293
        %p697 = pneg %p290
        %p698 = pneg %p314
        %p699 = pneg %p311
        %p700 = pneg %p335
        %p701 = pneg %p332
        %p702 = pneg %p356
        %p703 = pneg %p353
        %p704 = pneg %p377
        %p705 = pneg %p374
        %p706 = pneg %p398
        %p707 = pneg %p395
        %p708 = pneg %p419
        %p709 = pneg %p416
        %p710 = pneg %p440
        %p711 = pneg %p437
        %p712 = pneg %p466
        %p713 = pneg %p463
        %s714 = sand.u32 %s453, 1
        %s715 = scalar_lea.sflag [#allocation6], %s714
        %s716 = sand.u32 %s453, 1
        %s717 = scalar_lea.vmem [#allocation19], %s716
        %s718 = smul.u32 2, %s41
        %p719 = scmp.lt.s32.totalorder %s718, 3
        %s720 = scalar_select %p719, %s718, 3
        %s721 = smul.addr %s720, 8
        %s722 = scalar_lea.vmem %s0, %s721
        %s723 = smul.u32 2, %s41
        %v725 = vld [vmem:[%s722] sm:$0xff]
        %v726 = vld [vmem:[%s722 + $0x8] sm:$0xff]
        %729 = vrot.lane.b32.xlu0 %v725, 127
        %v730 = vpop.permute.xlu0 %729
        %731 = vrot.lane.b32.xlu0 %v726, 127
        %v732 = vpop.permute.xlu0 %731
        %v735 = vmax.f32 %v725, %v730
        %v736 = vmax.f32 %v726, %v732
        %v737 = vsub.f32 %v725, %v735
        %v738 = vsub.f32 %v726, %v736
        %v739 = vmul.f32 %v737, 1.442695
        %v740 = vpow.pop %v739
        %v741 = vmul.f32 %v738, 1.442695
        %v742 = vpow.pop %v741
        %745 = vrot.lane.b32.xlu0 %v735, 1
        %v746 = vpop.permute.xlu0 %745
        %747 = vrot.lane.b32.xlu0 %v736, 1
        %v748 = vpop.permute.xlu0 %747
        %v751 = vsub.f32 %v725, %v746
        %v752 = vsub.f32 %v726, %v748
        %v753 = vmul.f32 %v751, 1.442695
        %v754 = vpow.pop %v753
        %v755 = vmul.f32 %v752, 1.442695
        %v756 = vpow.pop %v755
        %759 = vrot.lane.b32.xlu0 %v754, 127
        %v760 = vpop.permute.xlu0 %759
        %761 = vrot.lane.b32.xlu0 %v756, 127
        %v762 = vpop.permute.xlu0 %761
        %v765 = vadd.f32 %v740, %v760
        %v766 = vadd.f32 %v742, %v762
        %v767 = vrcp.pop %v765
        %v768 = vmul.f32 %v740, %v767
        %v769 = vrcp.pop %v766
        %v770 = vmul.f32 %v742, %v769
        %773 = vrot.lane.b32.xlu0 %v765, 1
        %v774 = vpop.permute.xlu0 %773
        %775 = vrot.lane.b32.xlu0 %v766, 1
        %v776 = vpop.permute.xlu0 %775
        %v779 = vrcp.pop %v774
        %v780 = vmul.f32 %v754, %v779
        %v781 = vrcp.pop %v776
        %v782 = vmul.f32 %v756, %v781
        %v783 = vld [vmem:[%s2] sm:$0xf]
        %785 = vset.pattern.permute.xlu0 0
        %786 = vperm.xlu0 %785, %v768
        %v787 = vpop.permute.xlu0 %786
        %790 = vset.pattern.permute.xlu0 0
        %791 = vperm.xlu0 %790, %v770
        %v792 = vpop.permute.xlu0 %791
        %v794 = vlaneseq
        %v795 = vshrl.u32 %v794, 7
        %v796 = vsub.s32 0, %v795
        %v797 = vrot.slane %v783, %v796
        %v798 = vmul.f32 %v787, %v797
        %v799 = vmul.f32 %v792, %v797
        %801 = vset.pattern.permute.xlu0 1
        %802 = vperm.xlu0 %801, %v780
        %v803 = vpop.permute.xlu0 %802
        %806 = vset.pattern.permute.xlu0 1
        %807 = vperm.xlu0 %806, %v782
        %v808 = vpop.permute.xlu0 %807
        %v810 = vlaneseq
        %v811 = vshrl.u32 %v810, 7
        %v812 = vsub.s32 1, %v811
        %v813 = vrot.slane %v783, %v812
        %v814 = vmul.f32 %v803, %v813
        %v815 = vmul.f32 %v808, %v813
        %v816 = vadd.f32 %v798, %v814
        %v817 = vadd.f32 %v799, %v815
        %vm818 = vcmp.eq.f32.partialorder %v725, 0.0
        %vm819 = vcmp.eq.f32.partialorder %v726, 0.0
        %v820 = vsel %vm818, 1, 0
        %v821 = vsel %vm819, 1, 0
        %822 = vset.pattern.permute.xlu0 2
        %823 = vperm.xlu0 %822, %v820
        %v824 = vpop.permute.xlu0 %823
        %825 = vset.pattern.permute.xlu0 2
        %826 = vperm.xlu0 %825, %v821
        %v827 = vpop.permute.xlu0 %826
        %vm828 = vcmp.eq.s32.totalorder %v824, 1
        %vm829 = vcmp.eq.s32.totalorder %v827, 1
        %v830 = vlaneseq
        %v831 = vshrl.u32 %v830, 7
        %v832 = vsub.s32 2, %v831
        %v833 = vrot.slane %v783, %v832
        %v834 = vsel %vm828, %v833, 0.0
        %v835 = vsel %vm829, %v833, 0.0
        %v836 = vadd.f32 %v816, %v834
        %v837 = vadd.f32 %v817, %v835
        %vm838 = vcmp.eq.f32.partialorder %v725, 1.0
        %vm839 = vcmp.eq.f32.partialorder %v726, 1.0
        %v840 = vsel %vm838, 1, 0
        %v841 = vsel %vm839, 1, 0
        %842 = vset.pattern.permute.xlu0 2
        %843 = vperm.xlu0 %842, %v840
        %v844 = vpop.permute.xlu0 %843
        %845 = vset.pattern.permute.xlu0 2
        %846 = vperm.xlu0 %845, %v841
        %v847 = vpop.permute.xlu0 %846
        %vm848 = vcmp.eq.s32.totalorder %v844, 1
        %vm849 = vcmp.eq.s32.totalorder %v847, 1
        %v850 = vlaneseq
        %v851 = vshrl.u32 %v850, 7
        %v852 = vsub.s32 3, %v851
        %v853 = vrot.slane %v783, %v852
        %v854 = vsel %vm848, %v853, 0.0
        %v855 = vsel %vm849, %v853, 0.0
        %v856 = vadd.f32 %v836, %v854
        %v857 = vadd.f32 %v837, %v855
        %v858 = vld [vmem:[#allocation4] sm:$0x1]
        %v860 = vlaneseq
        %v861 = vshrl.u32 %v860, 7
        %v862 = vsub.s32 0, %v861
        %v863 = vrot.slane %v858, %v862
        %v865 = vadd.f32 %v856, %v863
        %v866 = vadd.f32 %v857, %v863
        %v867 = vpack.c.bf16 %v866, %v865
        %vm868 = vcmp.gt.bf16.partialorder %v867, 0
        %v869 = vld [vmem:[#allocation7] sm:$0x1]
        %v871 = vpack.i.b16 %v869, %v869
        %v873 = vlaneseq
        %v874 = vshrl.u32 %v873, 7
        %v875 = vsub.s32 0, %v874
        %v876 = vrot.slane %v871, %v875
        %v877 = vmul.bf16 %v876, %v867
        %v878 = vsel %vm868, %v867, %v877
        %v879 = vld [vmem:[%s5] sm:$0xf]
        %v880 = vld [vmem:[%s5 + $0x4] sm:$0xf]
        %v881 = vld [vmem:[%s5 + $0x8] sm:$0xf]
        %v882 = vld [vmem:[%s5 + $0xc] sm:$0xf]
        %v887 = vunpack.c.l.b16 %v879
        %v888 = vunpack.c.l.b16 %v880
        %v889 = vunpack.c.l.b16 %v881
        %v890 = vunpack.c.l.b16 %v882
        %v891 = vpack.c.b16 %v888, %v887
        %v892 = vpack.c.b16 %v890, %v889
        %vm895 = vcmask 261120
        %v897 = vsel %vm895, %v878, 0
        %899 = vmatprep.subr.bf16.mxu0 0
        %900 = vmatpush1.bf16.msra.mxu0 0
        %901 = vmatprep.subr.bf16.mxu0 0
        %902 = vmatpush1.bf16.msra.mxu0 0
        %903 = vmatprep.subr.bf16.mxu0 0
        %904 = vmatpush1.bf16.msra.mxu0 0
        %905 = vmatprep.subr.bf16.mxu0 0
        %906 = vmatpush1.bf16.msra.mxu0 0
        %907 = vmatprep.subr.bf16.mxu0 0
        %908 = vmatpush1.bf16.msra.mxu0 0
        %909 = vmatprep.subr.bf16.mxu0 0
        %910 = vmatpush1.bf16.msra.mxu0 0
        %911 = vmatprep.subr.bf16.mxu0 0
        %912 = vmatpush1.bf16.msra.mxu0 %v892
        %913 = vmatprep.subr.bf16.mxu0 0
        %914 = vmatpush1.bf16.msra.mxu0 %v891
        %915 = vmatprep.subr.bf16.mxu0 0
        %916 = vmatpush2.bf16.msra.mxu0 0
        %917 = vmatprep.subr.bf16.mxu0 0
        %918 = vmatpush2.bf16.msra.mxu0 0
        %919 = vmatprep.subr.bf16.mxu0 0
        %920 = vmatpush2.bf16.msra.mxu0 0
        %921 = vmatprep.subr.bf16.mxu0 0
        %922 = vmatpush2.bf16.msra.mxu0 0
        %923 = vmatprep.subr.bf16.mxu0 0
        %924 = vmatpush2.bf16.msra.mxu0 0
        %925 = vmatprep.subr.bf16.mxu0 0
        %926 = vmatpush2.bf16.msra.mxu0 0
        %927 = vmatprep.subr.bf16.mxu0 0
        %928 = vmatpush2.bf16.msra.mxu0 0
        %929 = vmatprep.subr.bf16.mxu0 0
        %930 = vmatpush2.bf16.msra.mxu0 0
        %931 = vmatprep.mubr.bf16.mxu0 0
        %932 = vmatmul.mubr.bf16.gmra.mxu0 %v897
        %v933 = vpop.f32.mrf.mxu0
        %v934 = vadd.f32 0.0, %v933
        %v935 = vpop.f32.mrf.mxu0
        %v936 = vpop.f32.mrf.mxu0
        %v937 = vadd.f32 0.0, %v936
        %v938 = vpop.f32.mrf.mxu0
        %939 = vdwg.mxu0
        %v940 = vpack.c.bf16 %v937, %v934
        %v941 = vld [vmem:[#allocation9] sm:$0x1]
        %v943 = vpack.i.b16 %v941, %v941
        %v945 = vlaneseq
        %v946 = vshrl.u32 %v945, 7
        %v947 = vsub.s32 0, %v946
        %v948 = vrot.slane %v943, %v947
        %v949 = vadd.bf16 %v940, %v948
        %vm950 = vcmp.gt.bf16.partialorder %v949, 0
        %v951 = vld [vmem:[#allocation10] sm:$0x1]
        %v953 = vpack.i.b16 %v951, %v951
        %v955 = vlaneseq
        %v956 = vshrl.u32 %v955, 7
        %v957 = vsub.s32 0, %v956
        %v958 = vrot.slane %v953, %v957
        %v959 = vmul.bf16 %v958, %v949
        %v960 = vsel %vm950, %v949, %v959
        %v961 = vld [vmem:[%s8] sm:$0xf]
        %v962 = vld [vmem:[%s8 + $0x4] sm:$0xf]
        %v963 = vld [vmem:[%s8 + $0x8] sm:$0xf]
        %v964 = vld [vmem:[%s8 + $0xc] sm:$0xf]
        %v965 = vld [vmem:[%s8 + $0x10] sm:$0xf]
        %v966 = vld [vmem:[%s8 + $0x14] sm:$0xf]
        %v967 = vld [vmem:[%s8 + $0x18] sm:$0xf]
        %v968 = vld [vmem:[%s8 + $0x1c] sm:$0xf]
        %v977 = vunpack.c.l.b16 %v961
        %v978 = vunpack.c.l.b16 %v962
        %v979 = vunpack.c.l.b16 %v963
        %v980 = vunpack.c.l.b16 %v964
        %v981 = vunpack.c.l.b16 %v965
        %v982 = vunpack.c.l.b16 %v966
        %v983 = vunpack.c.l.b16 %v967
        %v984 = vunpack.c.l.b16 %v968
        %v985 = vpack.c.b16 %v978, %v977
        %v986 = vpack.c.b16 %v980, %v979
        %v987 = vpack.c.b16 %v982, %v981
        %v988 = vpack.c.b16 %v984, %v983
        %vm993 = vcmask 523264
        %v995 = vsel %vm993, %v960, 0
        %997 = vmatprep.subr.bf16.mxu0 0
        %998 = vmatpush1.bf16.msra.mxu0 0
        %999 = vmatprep.subr.bf16.mxu0 0
        %1000 = vmatpush1.bf16.msra.mxu0 0
        %1001 = vmatprep.subr.bf16.mxu0 0
        %1002 = vmatpush1.bf16.msra.mxu0 0
        %1003 = vmatprep.subr.bf16.mxu0 0
        %1004 = vmatpush1.bf16.msra.mxu0 0
        %1005 = vmatprep.subr.bf16.mxu0 0
        %1006 = vmatpush1.bf16.msra.mxu0 %v988
        %1007 = vmatprep.subr.bf16.mxu0 0
        %1008 = vmatpush1.bf16.msra.mxu0 %v987
        %1009 = vmatprep.subr.bf16.mxu0 0
        %1010 = vmatpush1.bf16.msra.mxu0 %v986
        %1011 = vmatprep.subr.bf16.mxu0 0
        %1012 = vmatpush1.bf16.msra.mxu0 %v985
        %1013 = vmatprep.subr.bf16.mxu0 0
        %1014 = vmatpush2.bf16.msra.mxu0 0
        %1015 = vmatprep.subr.bf16.mxu0 0
        %1016 = vmatpush2.bf16.msra.mxu0 0
        %1017 = vmatprep.subr.bf16.mxu0 0
        %1018 = vmatpush2.bf16.msra.mxu0 0
        %1019 = vmatprep.subr.bf16.mxu0 0
        %1020 = vmatpush2.bf16.msra.mxu0 0
        %1021 = vmatprep.subr.bf16.mxu0 0
        %1022 = vmatpush2.bf16.msra.mxu0 0
        %1023 = vmatprep.subr.bf16.mxu0 0
        %1024 = vmatpush2.bf16.msra.mxu0 0
        %1025 = vmatprep.subr.bf16.mxu0 0
        %1026 = vmatpush2.bf16.msra.mxu0 0
        %1027 = vmatprep.subr.bf16.mxu0 0
        %1028 = vmatpush2.bf16.msra.mxu0 0
        %1029 = vmatprep.mubr.bf16.mxu0 0
        %1030 = vmatmul.mubr.bf16.gmra.mxu0 %v995
        %v1031 = vpop.f32.mrf.mxu0
        %v1032 = vadd.f32 0.0, %v1031
        %v1033 = vpop.f32.mrf.mxu0
        %v1034 = vpop.f32.mrf.mxu0
        %v1035 = vadd.f32 0.0, %v1034
        %v1036 = vpop.f32.mrf.mxu0
        %1037 = vdwg.mxu0
        %v1038 = vpack.c.bf16 %v1035, %v1032
        %v1039 = vld [vmem:[#allocation12] sm:$0x1]
        %v1041 = vpack.i.b16 %v1039, %v1039
        %v1043 = vlaneseq
        %v1044 = vshrl.u32 %v1043, 7
        %v1045 = vsub.s32 0, %v1044
        %v1046 = vrot.slane %v1041, %v1045
        %v1047 = vadd.bf16 %v1038, %v1046
        %vm1048 = vcmp.gt.bf16.partialorder %v1047, 0
        %v1049 = vld [vmem:[#allocation13] sm:$0x1]
        %v1051 = vpack.i.b16 %v1049, %v1049
        %v1053 = vlaneseq
        %v1054 = vshrl.u32 %v1053, 7
        %v1055 = vsub.s32 0, %v1054
        %v1056 = vrot.slane %v1051, %v1055
        %v1057 = vmul.bf16 %v1056, %v1047
        %v1058 = vsel %vm1048, %v1047, %v1057
        %v1059 = vld [vmem:[#allocation15] sm:$0xff]
        %v1060 = vld [vmem:[#allocation15 + $0x8] sm:$0xff]
        %v1061 = vld [vmem:[#allocation15 + $0x10] sm:$0xff]
        %v1062 = vld [vmem:[#allocation15 + $0x18] sm:$0xff]
        %v1063 = vld [vmem:[#allocation15 + $0x20] sm:$0xff]
        %v1064 = vld [vmem:[#allocation15 + $0x28] sm:$0xff]
        %v1065 = vld [vmem:[#allocation15 + $0x30] sm:$0xff]
        %v1066 = vld [vmem:[#allocation15 + $0x38] sm:$0xff]
        %v1067 = vld [vmem:[#allocation15 + $0x40] sm:$0xff]
        %v1068 = vld [vmem:[#allocation15 + $0x48] sm:$0xff]
        %v1069 = vld [vmem:[#allocation15 + $0x50] sm:$0xff]
        %v1070 = vld [vmem:[#allocation15 + $0x58] sm:$0xff]
        %v1071 = vld [vmem:[#allocation15 + $0x60] sm:$0xff]
        %v1072 = vld [vmem:[#allocation15 + $0x68] sm:$0xff]
        %v1073 = vld [vmem:[#allocation15 + $0x70] sm:$0xff]
        %v1074 = vld [vmem:[#allocation15 + $0x78] sm:$0xff]
        %v1091 = vunpack.c.l.b16 %v1059
        %v1092 = vunpack.c.h.b16 %v1059
        %v1093 = vunpack.c.l.b16 %v1060
        %v1094 = vunpack.c.h.b16 %v1060
        %v1095 = vunpack.c.l.b16 %v1061
        %v1096 = vunpack.c.h.b16 %v1061
        %v1097 = vunpack.c.l.b16 %v1062
        %v1098 = vunpack.c.h.b16 %v1062
        %v1099 = vunpack.c.l.b16 %v1063
        %v1100 = vunpack.c.h.b16 %v1063
        %v1101 = vunpack.c.l.b16 %v1064
        %v1102 = vunpack.c.h.b16 %v1064
        %v1103 = vunpack.c.l.b16 %v1065
        %v1104 = vunpack.c.h.b16 %v1065
        %v1105 = vunpack.c.l.b16 %v1066
        %v1106 = vunpack.c.h.b16 %v1066
        %v1107 = vunpack.c.l.b16 %v1067
        %v1108 = vunpack.c.h.b16 %v1067
        %v1109 = vunpack.c.l.b16 %v1068
        %v1110 = vunpack.c.h.b16 %v1068
        %v1111 = vunpack.c.l.b16 %v1069
        %v1112 = vunpack.c.h.b16 %v1069
        %v1113 = vunpack.c.l.b16 %v1070
        %v1114 = vunpack.c.h.b16 %v1070
        %v1115 = vunpack.c.l.b16 %v1071
        %v1116 = vunpack.c.h.b16 %v1071
        %v1117 = vunpack.c.l.b16 %v1072
        %v1118 = vunpack.c.h.b16 %v1072
        %v1119 = vunpack.c.l.b16 %v1073
        %v1120 = vunpack.c.h.b16 %v1073
        %v1121 = vunpack.c.l.b16 %v1074
        %v1122 = vunpack.c.h.b16 %v1074
        %v1123 = vpack.c.b16 %v1093, %v1091
        %v1124 = vpack.c.b16 %v1094, %v1092
        %v1125 = vpack.c.b16 %v1097, %v1095
        %v1126 = vpack.c.b16 %v1098, %v1096
        %v1127 = vpack.c.b16 %v1101, %v1099
        %v1128 = vpack.c.b16 %v1102, %v1100
        %v1129 = vpack.c.b16 %v1105, %v1103
        %v1130 = vpack.c.b16 %v1106, %v1104
        %v1131 = vpack.c.b16 %v1109, %v1107
        %v1132 = vpack.c.b16 %v1110, %v1108
        %v1133 = vpack.c.b16 %v1113, %v1111
        %v1134 = vpack.c.b16 %v1114, %v1112
        %v1135 = vpack.c.b16 %v1117, %v1115
        %v1136 = vpack.c.b16 %v1118, %v1116
        %v1137 = vpack.c.b16 %v1121, %v1119
        %v1138 = vpack.c.b16 %v1122, %v1120
        %1155 = vmatprep.subr.bf16.mxu0 %v1138
        %1156 = vmatpush1.bf16.msra.mxu0 %v1137
        %1157 = vmatprep.subr.bf16.mxu0 %v1136
        %1158 = vmatpush1.bf16.msra.mxu0 %v1135
        %1159 = vmatprep.subr.bf16.mxu0 %v1134
        %1160 = vmatpush1.bf16.msra.mxu0 %v1133
        %1161 = vmatprep.subr.bf16.mxu0 %v1132
        %1162 = vmatpush1.bf16.msra.mxu0 %v1131
        %1163 = vmatprep.subr.bf16.mxu0 %v1130
        %1164 = vmatpush1.bf16.msra.mxu0 %v1129
        %1165 = vmatprep.subr.bf16.mxu0 %v1128
        %1166 = vmatpush1.bf16.msra.mxu0 %v1127
        %1167 = vmatprep.subr.bf16.mxu0 %v1126
        %1168 = vmatpush1.bf16.msra.mxu0 %v1125
        %1169 = vmatprep.subr.bf16.mxu0 %v1124
        %1170 = vmatpush1.bf16.msra.mxu0 %v1123
        %1171 = vmatprep.subr.bf16.mxu0 0
        %1172 = vmatpush2.bf16.msra.mxu0 0
        %1173 = vmatprep.subr.bf16.mxu0 0
        %1174 = vmatpush2.bf16.msra.mxu0 0
        %1175 = vmatprep.subr.bf16.mxu0 0
        %1176 = vmatpush2.bf16.msra.mxu0 0
        %1177 = vmatprep.subr.bf16.mxu0 0
        %1178 = vmatpush2.bf16.msra.mxu0 0
        %1179 = vmatprep.subr.bf16.mxu0 0
        %1180 = vmatpush2.bf16.msra.mxu0 0
        %1181 = vmatprep.subr.bf16.mxu0 0
        %1182 = vmatpush2.bf16.msra.mxu0 0
        %1183 = vmatprep.subr.bf16.mxu0 0
        %1184 = vmatpush2.bf16.msra.mxu0 0
        %1185 = vmatprep.subr.bf16.mxu0 0
        %1186 = vmatpush2.bf16.msra.mxu0 0
        %1187 = vmatprep.mubr.bf16.mxu0 0
        %1188 = vmatmul.mubr.bf16.gmra.mxu0 %v1058
        %v1189 = vpop.f32.mrf.mxu0
        %v1190 = vadd.f32 0.0, %v1189
        %v1191 = vpop.f32.mrf.mxu0
        %v1192 = vadd.f32 0.0, %v1191
        %v1193 = vpop.f32.mrf.mxu0
        %v1194 = vadd.f32 0.0, %v1193
        %v1195 = vpop.f32.mrf.mxu0
        %v1196 = vadd.f32 0.0, %v1195
        %1197 = vdwg.mxu0
        %v1198 = vpack.c.bf16 %v1194, %v1190
        %v1199 = vpack.c.bf16 %v1196, %v1192
        %v1200 = vld [vmem:[%s12] sm:$0x3]
        %v1203 = vunpack.c.l.s4 1966171168
        %v1204 = vunpack.c.0.s8 %v1203
        %v1205 = vlaneseq
        %v1206 = vshrl.u32 %v1205, 7
        %v1207 = vsub.s32 %v1204, %v1206
        %v1208 = vrot.slane %v1200, %v1207
        %v1209 = vcombine.high %v1208, %v1208
        %v1211 = vunpack.c.l.s4 1966171168
        %v1212 = vunpack.c.0.s8 %v1211
        %v1213 = vlaneseq
        %v1214 = vshrl.u32 %v1213, 7
        %v1215 = vsub.s32 %v1212, %v1214
        %v1216 = vrot.slane %v1208, %v1215
        %v1218 = vunpack.c.l.s4 1966171168
        %v1219 = vunpack.c.0.s8 %v1218
        %v1220 = vlaneseq
        %v1221 = vshrl.u32 %v1220, 7
        %v1222 = vsub.s32 %v1219, %v1221
        %v1223 = vrot.slane %v1209, %v1222
        %v1225 = vpack.i.b16 %v1216, %v1216
        %v1227 = vlaneseq
        %v1228 = vshrl.u32 %v1227, 7
        %v1229 = vsub.s32 0, %v1228
        %v1230 = vrot.slane %v1225, %v1229
        %v1232 = vpack.i.b16 %v1223, %v1223
        %v1234 = vlaneseq
        %v1235 = vshrl.u32 %v1234, 7
        %v1236 = vsub.s32 0, %v1235
        %v1237 = vrot.slane %v1232, %v1236
        %v1238 = vadd.bf16 %v1198, %v1230
        %v1239 = vadd.bf16 %v1199, %v1237
        %vm1240 = vcmp.gt.bf16.partialorder %v1238, 0
        %vm1241 = vcmp.gt.bf16.partialorder %v1239, 0
        %v1242 = vld [vmem:[%s13] sm:$0x3]
        %v1245 = vunpack.c.l.s4 1966171168
        %v1246 = vunpack.c.0.s8 %v1245
        %v1247 = vlaneseq
        %v1248 = vshrl.u32 %v1247, 7
        %v1249 = vsub.s32 %v1246, %v1248
        %v1250 = vrot.slane %v1242, %v1249
        %v1251 = vcombine.high %v1250, %v1250
        %v1253 = vunpack.c.l.s4 1966171168
        %v1254 = vunpack.c.0.s8 %v1253
        %v1255 = vlaneseq
        %v1256 = vshrl.u32 %v1255, 7
        %v1257 = vsub.s32 %v1254, %v1256
        %v1258 = vrot.slane %v1250, %v1257
        %v1260 = vunpack.c.l.s4 1966171168
        %v1261 = vunpack.c.0.s8 %v1260
        %v1262 = vlaneseq
        %v1263 = vshrl.u32 %v1262, 7
        %v1264 = vsub.s32 %v1261, %v1263
        %v1265 = vrot.slane %v1251, %v1264
        %v1267 = vpack.i.b16 %v1258, %v1258
        %v1269 = vlaneseq
        %v1270 = vshrl.u32 %v1269, 7
        %v1271 = vsub.s32 0, %v1270
        %v1272 = vrot.slane %v1267, %v1271
        %v1274 = vpack.i.b16 %v1265, %v1265
        %v1276 = vlaneseq
        %v1277 = vshrl.u32 %v1276, 7
        %v1278 = vsub.s32 0, %v1277
        %v1279 = vrot.slane %v1274, %v1278
        %v1280 = vmul.bf16 %v1272, %v1238
        %v1281 = vmul.bf16 %v1279, %v1239
        %v1282 = vsel %vm1240, %v1238, %v1280
        %v1283 = vsel %vm1241, %v1239, %v1281
        %v1284 = vld [vmem:[#allocation16] sm:$0xff]
        %v1285 = vld [vmem:[#allocation16 + $0x8] sm:$0xff]
        %v1286 = vld [vmem:[#allocation16 + $0x10] sm:$0xff]
        %v1287 = vld [vmem:[#allocation16 + $0x18] sm:$0xff]
        %v1288 = vld [vmem:[#allocation16 + $0x20] sm:$0xff]
        %v1289 = vld [vmem:[#allocation16 + $0x28] sm:$0xff]
        %v1290 = vld [vmem:[#allocation16 + $0x30] sm:$0xff]
        %v1291 = vld [vmem:[#allocation16 + $0x38] sm:$0xff]
        %v1292 = vld [vmem:[#allocation16 + $0x40] sm:$0xff]
        %v1293 = vld [vmem:[#allocation16 + $0x48] sm:$0xff]
        %v1294 = vld [vmem:[#allocation16 + $0x50] sm:$0xff]
        %v1295 = vld [vmem:[#allocation16 + $0x58] sm:$0xff]
        %v1296 = vld [vmem:[#allocation16 + $0x60] sm:$0xff]
        %v1297 = vld [vmem:[#allocation16 + $0x68] sm:$0xff]
        %v1298 = vld [vmem:[#allocation16 + $0x70] sm:$0xff]
        %v1299 = vld [vmem:[#allocation16 + $0x78] sm:$0xff]
        %v1300 = vld [vmem:[#allocation16 + $0x80] sm:$0xff]
        %v1301 = vld [vmem:[#allocation16 + $0x88] sm:$0xff]
        %v1302 = vld [vmem:[#allocation16 + $0x90] sm:$0xff]
        %v1303 = vld [vmem:[#allocation16 + $0x98] sm:$0xff]
        %v1304 = vld [vmem:[#allocation16 + $0xa0] sm:$0xff]
        %v1305 = vld [vmem:[#allocation16 + $0xa8] sm:$0xff]
        %v1306 = vld [vmem:[#allocation16 + $0xb0] sm:$0xff]
        %v1307 = vld [vmem:[#allocation16 + $0xb8] sm:$0xff]
        %v1308 = vld [vmem:[#allocation16 + $0xc0] sm:$0xff]
        %v1309 = vld [vmem:[#allocation16 + $0xc8] sm:$0xff]
        %v1310 = vld [vmem:[#allocation16 + $0xd0] sm:$0xff]
        %v1311 = vld [vmem:[#allocation16 + $0xd8] sm:$0xff]
        %v1312 = vld [vmem:[#allocation16 + $0xe0] sm:$0xff]
        %v1313 = vld [vmem:[#allocation16 + $0xe8] sm:$0xff]
        %v1314 = vld [vmem:[#allocation16 + $0xf0] sm:$0xff]
        %v1315 = vld [vmem:[#allocation16 + $0xf8] sm:$0xff]
        %v1316 = vld [vmem:[#allocation16 + $0x100] sm:$0xff]
        %v1317 = vld [vmem:[#allocation16 + $0x108] sm:$0xff]
        %v1318 = vld [vmem:[#allocation16 + $0x110] sm:$0xff]
        %v1319 = vld [vmem:[#allocation16 + $0x118] sm:$0xff]
        %v1320 = vld [vmem:[#allocation16 + $0x120] sm:$0xff]
        %v1321 = vld [vmem:[#allocation16 + $0x128] sm:$0xff]
        %v1322 = vld [vmem:[#allocation16 + $0x130] sm:$0xff]
        %v1323 = vld [vmem:[#allocation16 + $0x138] sm:$0xff]
        %v1324 = vld [vmem:[#allocation16 + $0x140] sm:$0xff]
        %v1325 = vld [vmem:[#allocation16 + $0x148] sm:$0xff]
        %v1326 = vld [vmem:[#allocation16 + $0x150] sm:$0xff]
        %v1327 = vld [vmem:[#allocation16 + $0x158] sm:$0xff]
        %v1328 = vld [vmem:[#allocation16 + $0x160] sm:$0xff]
        %v1329 = vld [vmem:[#allocation16 + $0x168] sm:$0xff]
        %v1330 = vld [vmem:[#allocation16 + $0x170] sm:$0xff]
        %v1331 = vld [vmem:[#allocation16 + $0x178] sm:$0xff]
        %v1332 = vld [vmem:[#allocation16 + $0x180] sm:$0xff]
        %v1333 = vld [vmem:[#allocation16 + $0x188] sm:$0xff]
        %v1334 = vld [vmem:[#allocation16 + $0x190] sm:$0xff]
        %v1335 = vld [vmem:[#allocation16 + $0x198] sm:$0xff]
        %v1336 = vld [vmem:[#allocation16 + $0x1a0] sm:$0xff]
        %v1337 = vld [vmem:[#allocation16 + $0x1a8] sm:$0xff]
        %v1338 = vld [vmem:[#allocation16 + $0x1b0] sm:$0xff]
        %v1339 = vld [vmem:[#allocation16 + $0x1b8] sm:$0xff]
        %v1340 = vld [vmem:[#allocation16 + $0x1c0] sm:$0xff]
        %v1341 = vld [vmem:[#allocation16 + $0x1c8] sm:$0xff]
        %v1342 = vld [vmem:[#allocation16 + $0x1d0] sm:$0xff]
        %v1343 = vld [vmem:[#allocation16 + $0x1d8] sm:$0xff]
        %v1344 = vld [vmem:[#allocation16 + $0x1e0] sm:$0xff]
        %v1345 = vld [vmem:[#allocation16 + $0x1e8] sm:$0xff]
        %v1346 = vld [vmem:[#allocation16 + $0x1f0] sm:$0xff]
        %v1347 = vld [vmem:[#allocation16 + $0x1f8] sm:$0xff]
        %v1412 = vunpack.c.l.b16 %v1284
        %v1413 = vunpack.c.h.b16 %v1284
        %v1414 = vunpack.c.l.b16 %v1285
        %v1415 = vunpack.c.h.b16 %v1285
        %v1416 = vunpack.c.l.b16 %v1286
        %v1417 = vunpack.c.h.b16 %v1286
        %v1418 = vunpack.c.l.b16 %v1287
        %v1419 = vunpack.c.h.b16 %v1287
        %v1420 = vunpack.c.l.b16 %v1288
        %v1421 = vunpack.c.h.b16 %v1288
        %v1422 = vunpack.c.l.b16 %v1289
        %v1423 = vunpack.c.h.b16 %v1289
        %v1424 = vunpack.c.l.b16 %v1290
        %v1425 = vunpack.c.h.b16 %v1290
        %v1426 = vunpack.c.l.b16 %v1291
        %v1427 = vunpack.c.h.b16 %v1291
        %v1428 = vunpack.c.l.b16 %v1292
        %v1429 = vunpack.c.h.b16 %v1292
        %v1430 = vunpack.c.l.b16 %v1293
        %v1431 = vunpack.c.h.b16 %v1293
        %v1432 = vunpack.c.l.b16 %v1294
        %v1433 = vunpack.c.h.b16 %v1294
        %v1434 = vunpack.c.l.b16 %v1295
        %v1435 = vunpack.c.h.b16 %v1295
        %v1436 = vunpack.c.l.b16 %v1296
        %v1437 = vunpack.c.h.b16 %v1296
        %v1438 = vunpack.c.l.b16 %v1297
        %v1439 = vunpack.c.h.b16 %v1297
        %v1440 = vunpack.c.l.b16 %v1298
        %v1441 = vunpack.c.h.b16 %v1298
        %v1442 = vunpack.c.l.b16 %v1299
        %v1443 = vunpack.c.h.b16 %v1299
        %v1444 = vunpack.c.l.b16 %v1300
        %v1445 = vunpack.c.h.b16 %v1300
        %v1446 = vunpack.c.l.b16 %v1301
        %v1447 = vunpack.c.h.b16 %v1301
        %v1448 = vunpack.c.l.b16 %v1302
        %v1449 = vunpack.c.h.b16 %v1302
        %v1450 = vunpack.c.l.b16 %v1303
        %v1451 = vunpack.c.h.b16 %v1303
        %v1452 = vunpack.c.l.b16 %v1304
        %v1453 = vunpack.c.h.b16 %v1304
        %v1454 = vunpack.c.l.b16 %v1305
        %v1455 = vunpack.c.h.b16 %v1305
        %v1456 = vunpack.c.l.b16 %v1306
        %v1457 = vunpack.c.h.b16 %v1306
        %v1458 = vunpack.c.l.b16 %v1307
        %v1459 = vunpack.c.h.b16 %v1307
        %v1460 = vunpack.c.l.b16 %v1308
        %v1461 = vunpack.c.h.b16 %v1308
        %v1462 = vunpack.c.l.b16 %v1309
        %v1463 = vunpack.c.h.b16 %v1309
        %v1464 = vunpack.c.l.b16 %v1310
        %v1465 = vunpack.c.h.b16 %v1310
        %v1466 = vunpack.c.l.b16 %v1311
        %v1467 = vunpack.c.h.b16 %v1311
        %v1468 = vunpack.c.l.b16 %v1312
        %v1469 = vunpack.c.h.b16 %v1312
        %v1470 = vunpack.c.l.b16 %v1313
        %v1471 = vunpack.c.h.b16 %v1313
        %v1472 = vunpack.c.l.b16 %v1314
        %v1473 = vunpack.c.h.b16 %v1314
        %v1474 = vunpack.c.l.b16 %v1315
        %v1475 = vunpack.c.h.b16 %v1315
        %v1476 = vunpack.c.l.b16 %v1316
        %v1477 = vunpack.c.h.b16 %v1316
        %v1478 = vunpack.c.l.b16 %v1317
        %v1479 = vunpack.c.h.b16 %v1317
        %v1480 = vunpack.c.l.b16 %v1318
        %v1481 = vunpack.c.h.b16 %v1318
        %v1482 = vunpack.c.l.b16 %v1319
        %v1483 = vunpack.c.h.b16 %v1319
        %v1484 = vunpack.c.l.b16 %v1320
        %v1485 = vunpack.c.h.b16 %v1320
        %v1486 = vunpack.c.l.b16 %v1321
        %v1487 = vunpack.c.h.b16 %v1321
        %v1488 = vunpack.c.l.b16 %v1322
        %v1489 = vunpack.c.h.b16 %v1322
        %v1490 = vunpack.c.l.b16 %v1323
        %v1491 = vunpack.c.h.b16 %v1323
        %v1492 = vunpack.c.l.b16 %v1324
        %v1493 = vunpack.c.h.b16 %v1324
        %v1494 = vunpack.c.l.b16 %v1325
        %v1495 = vunpack.c.h.b16 %v1325
        %v1496 = vunpack.c.l.b16 %v1326
        %v1497 = vunpack.c.h.b16 %v1326
        %v1498 = vunpack.c.l.b16 %v1327
        %v1499 = vunpack.c.h.b16 %v1327
        %v1500 = vunpack.c.l.b16 %v1328
        %v1501 = vunpack.c.h.b16 %v1328
        %v1502 = vunpack.c.l.b16 %v1329
        %v1503 = vunpack.c.h.b16 %v1329
        %v1504 = vunpack.c.l.b16 %v1330
        %v1505 = vunpack.c.h.b16 %v1330
        %v1506 = vunpack.c.l.b16 %v1331
        %v1507 = vunpack.c.h.b16 %v1331
        %v1508 = vunpack.c.l.b16 %v1332
        %v1509 = vunpack.c.h.b16 %v1332
        %v1510 = vunpack.c.l.b16 %v1333
        %v1511 = vunpack.c.h.b16 %v1333
        %v1512 = vunpack.c.l.b16 %v1334
        %v1513 = vunpack.c.h.b16 %v1334
        %v1514 = vunpack.c.l.b16 %v1335
        %v1515 = vunpack.c.h.b16 %v1335
        %v1516 = vunpack.c.l.b16 %v1336
        %v1517 = vunpack.c.h.b16 %v1336
        %v1518 = vunpack.c.l.b16 %v1337
        %v1519 = vunpack.c.h.b16 %v1337
        %v1520 = vunpack.c.l.b16 %v1338
        %v1521 = vunpack.c.h.b16 %v1338
        %v1522 = vunpack.c.l.b16 %v1339
        %v1523 = vunpack.c.h.b16 %v1339
        %v1524 = vunpack.c.l.b16 %v1340
        %v1525 = vunpack.c.h.b16 %v1340
        %v1526 = vunpack.c.l.b16 %v1341
        %v1527 = vunpack.c.h.b16 %v1341
        %v1528 = vunpack.c.l.b16 %v1342
        %v1529 = vunpack.c.h.b16 %v1342
        %v1530 = vunpack.c.l.b16 %v1343
        %v1531 = vunpack.c.h.b16 %v1343
        %v1532 = vunpack.c.l.b16 %v1344
        %v1533 = vunpack.c.h.b16 %v1344
        %v1534 = vunpack.c.l.b16 %v1345
        %v1535 = vunpack.c.h.b16 %v1345
        %v1536 = vunpack.c.l.b16 %v1346
        %v1537 = vunpack.c.h.b16 %v1346
        %v1538 = vunpack.c.l.b16 %v1347
        %v1539 = vunpack.c.h.b16 %v1347
        %v1540 = vpack.c.b16 %v1416, %v1412
        %v1541 = vpack.c.b16 %v1417, %v1413
        %v1542 = vpack.c.b16 %v1418, %v1414
        %v1543 = vpack.c.b16 %v1419, %v1415
        %v1544 = vpack.c.b16 %v1424, %v1420
        %v1545 = vpack.c.b16 %v1425, %v1421
        %v1546 = vpack.c.b16 %v1426, %v1422
        %v1547 = vpack.c.b16 %v1427, %v1423
        %v1548 = vpack.c.b16 %v1432, %v1428
        %v1549 = vpack.c.b16 %v1433, %v1429
        %v1550 = vpack.c.b16 %v1434, %v1430
        %v1551 = vpack.c.b16 %v1435, %v1431
        %v1552 = vpack.c.b16 %v1440, %v1436
        %v1553 = vpack.c.b16 %v1441, %v1437
        %v1554 = vpack.c.b16 %v1442, %v1438
        %v1555 = vpack.c.b16 %v1443, %v1439
        %v1556 = vpack.c.b16 %v1448, %v1444
        %v1557 = vpack.c.b16 %v1449, %v1445
        %v1558 = vpack.c.b16 %v1450, %v1446
        %v1559 = vpack.c.b16 %v1451, %v1447
        %v1560 = vpack.c.b16 %v1456, %v1452
        %v1561 = vpack.c.b16 %v1457, %v1453
        %v1562 = vpack.c.b16 %v1458, %v1454
        %v1563 = vpack.c.b16 %v1459, %v1455
        %v1564 = vpack.c.b16 %v1464, %v1460
        %v1565 = vpack.c.b16 %v1465, %v1461
        %v1566 = vpack.c.b16 %v1466, %v1462
        %v1567 = vpack.c.b16 %v1467, %v1463
        %v1568 = vpack.c.b16 %v1472, %v1468
        %v1569 = vpack.c.b16 %v1473, %v1469
        %v1570 = vpack.c.b16 %v1474, %v1470
        %v1571 = vpack.c.b16 %v1475, %v1471
        %v1572 = vpack.c.b16 %v1480, %v1476
        %v1573 = vpack.c.b16 %v1481, %v1477
        %v1574 = vpack.c.b16 %v1482, %v1478
        %v1575 = vpack.c.b16 %v1483, %v1479
        %v1576 = vpack.c.b16 %v1488, %v1484
        %v1577 = vpack.c.b16 %v1489, %v1485
        %v1578 = vpack.c.b16 %v1490, %v1486
        %v1579 = vpack.c.b16 %v1491, %v1487
        %v1580 = vpack.c.b16 %v1496, %v1492
        %v1581 = vpack.c.b16 %v1497, %v1493
        %v1582 = vpack.c.b16 %v1498, %v1494
        %v1583 = vpack.c.b16 %v1499, %v1495
        %v1584 = vpack.c.b16 %v1504, %v1500
        %v1585 = vpack.c.b16 %v1505, %v1501
        %v1586 = vpack.c.b16 %v1506, %v1502
        %v1587 = vpack.c.b16 %v1507, %v1503
        %v1588 = vpack.c.b16 %v1512, %v1508
        %v1589 = vpack.c.b16 %v1513, %v1509
        %v1590 = vpack.c.b16 %v1514, %v1510
        %v1591 = vpack.c.b16 %v1515, %v1511
        %v1592 = vpack.c.b16 %v1520, %v1516
        %v1593 = vpack.c.b16 %v1521, %v1517
        %v1594 = vpack.c.b16 %v1522, %v1518
        %v1595 = vpack.c.b16 %v1523, %v1519
        %v1596 = vpack.c.b16 %v1528, %v1524
        %v1597 = vpack.c.b16 %v1529, %v1525
        %v1598 = vpack.c.b16 %v1530, %v1526
        %v1599 = vpack.c.b16 %v1531, %v1527
        %v1600 = vpack.c.b16 %v1536, %v1532
        %v1601 = vpack.c.b16 %v1537, %v1533
        %v1602 = vpack.c.b16 %v1538, %v1534
        %v1603 = vpack.c.b16 %v1539, %v1535
        %1668 = vmatprep.subr.bf16.mxu0 %v1569
        %1669 = vmatpush1.bf16.msra.mxu0 %v1568
        %1670 = vmatprep.subr.bf16.mxu0 %v1565
        %1671 = vmatpush1.bf16.msra.mxu0 %v1564
        %1672 = vmatprep.subr.bf16.mxu0 %v1561
        %1673 = vmatpush1.bf16.msra.mxu0 %v1560
        %1674 = vmatprep.subr.bf16.mxu0 %v1557
        %1675 = vmatpush1.bf16.msra.mxu0 %v1556
        %1676 = vmatprep.subr.bf16.mxu0 %v1553
        %1677 = vmatpush1.bf16.msra.mxu0 %v1552
        %1678 = vmatprep.subr.bf16.mxu0 %v1549
        %1679 = vmatpush1.bf16.msra.mxu0 %v1548
        %1680 = vmatprep.subr.bf16.mxu0 %v1545
        %1681 = vmatpush1.bf16.msra.mxu0 %v1544
        %1682 = vmatprep.subr.bf16.mxu0 %v1541
        %1683 = vmatpush1.bf16.msra.mxu0 %v1540
        %1684 = vmatprep.subr.bf16.mxu0 %v1601
        %1685 = vmatpush2.bf16.msra.mxu0 %v1600
        %1686 = vmatprep.subr.bf16.mxu0 %v1597
        %1687 = vmatpush2.bf16.msra.mxu0 %v1596
        %1688 = vmatprep.subr.bf16.mxu0 %v1593
        %1689 = vmatpush2.bf16.msra.mxu0 %v1592
        %1690 = vmatprep.subr.bf16.mxu0 %v1589
        %1691 = vmatpush2.bf16.msra.mxu0 %v1588
        %1692 = vmatprep.subr.bf16.mxu0 %v1585
        %1693 = vmatpush2.bf16.msra.mxu0 %v1584
        %1694 = vmatprep.subr.bf16.mxu0 %v1581
        %1695 = vmatpush2.bf16.msra.mxu0 %v1580
        %1696 = vmatprep.subr.bf16.mxu0 %v1577
        %1697 = vmatpush2.bf16.msra.mxu0 %v1576
        %1698 = vmatprep.subr.bf16.mxu0 %v1573
        %1699 = vmatpush2.bf16.msra.mxu0 %v1572
        %1700 = vmatprep.mubr.bf16.mxu0 %v1283
        %1701 = vmatmul.mubr.bf16.gmra.mxu0 %v1282
        %v1702 = vpop.f32.mrf.mxu0
        %v1703 = vadd.f32 0.0, %v1702
        %v1704 = vpop.f32.mrf.mxu0
        %v1705 = vadd.f32 0.0, %v1704
        %v1706 = vpop.f32.mrf.mxu0
        %v1707 = vadd.f32 0.0, %v1706
        %v1708 = vpop.f32.mrf.mxu0
        %v1709 = vadd.f32 0.0, %v1708
        %1710 = vdwg.mxu0
        %1711 = vmatprep.subr.bf16.mxu0 %v1571
        %1712 = vmatpush1.bf16.msra.mxu0 %v1570
        %1713 = vmatprep.subr.bf16.mxu0 %v1567
        %1714 = vmatpush1.bf16.msra.mxu0 %v1566
        %1715 = vmatprep.subr.bf16.mxu0 %v1563
        %1716 = vmatpush1.bf16.msra.mxu0 %v1562
        %1717 = vmatprep.subr.bf16.mxu0 %v1559
        %1718 = vmatpush1.bf16.msra.mxu0 %v1558
        %1719 = vmatprep.subr.bf16.mxu0 %v1555
        %1720 = vmatpush1.bf16.msra.mxu0 %v1554
        %1721 = vmatprep.subr.bf16.mxu0 %v1551
        %1722 = vmatpush1.bf16.msra.mxu0 %v1550
        %1723 = vmatprep.subr.bf16.mxu0 %v1547
        %1724 = vmatpush1.bf16.msra.mxu0 %v1546
        %1725 = vmatprep.subr.bf16.mxu0 %v1543
        %1726 = vmatpush1.bf16.msra.mxu0 %v1542
        %1727 = vmatprep.subr.bf16.mxu0 %v1603
        %1728 = vmatpush2.bf16.msra.mxu0 %v1602
        %1729 = vmatprep.subr.bf16.mxu0 %v1599
        %1730 = vmatpush2.bf16.msra.mxu0 %v1598
        %1731 = vmatprep.subr.bf16.mxu0 %v1595
        %1732 = vmatpush2.bf16.msra.mxu0 %v1594
        %1733 = vmatprep.subr.bf16.mxu0 %v1591
        %1734 = vmatpush2.bf16.msra.mxu0 %v1590
        %1735 = vmatprep.subr.bf16.mxu0 %v1587
        %1736 = vmatpush2.bf16.msra.mxu0 %v1586
        %1737 = vmatprep.subr.bf16.mxu0 %v1583
        %1738 = vmatpush2.bf16.msra.mxu0 %v1582
        %1739 = vmatprep.subr.bf16.mxu0 %v1579
        %1740 = vmatpush2.bf16.msra.mxu0 %v1578
        %1741 = vmatprep.subr.bf16.mxu0 %v1575
        %1742 = vmatpush2.bf16.msra.mxu0 %v1574
        %1743 = vmatprep.mubr.bf16.mxu0 %v1283
        %1744 = vmatmul.mubr.bf16.gmra.mxu0 %v1282
        %v1745 = vpop.f32.mrf.mxu0
        %v1746 = vadd.f32 0.0, %v1745
        %v1747 = vpop.f32.mrf.mxu0
        %v1748 = vadd.f32 0.0, %v1747
        %v1749 = vpop.f32.mrf.mxu0
        %v1750 = vadd.f32 0.0, %v1749
        %v1751 = vpop.f32.mrf.mxu0
        %v1752 = vadd.f32 0.0, %v1751
        %1753 = vdwg.mxu0
        %v1754 = vpack.c.bf16 %v1707, %v1703
        %v1755 = vpack.c.bf16 %v1709, %v1705
        %v1756 = vpack.c.bf16 %v1750, %v1746
        %v1757 = vpack.c.bf16 %v1752, %v1748
        %v1758 = vld [vmem:[%s15] sm:$0xf]
        %v1761 = vunpack.c.l.s4 1966171168
        %v1762 = vunpack.c.0.s8 %v1761
        %v1763 = vlaneseq
        %v1764 = vshrl.u32 %v1763, 7
        %v1765 = vsub.s32 %v1762, %v1764
        %v1766 = vrot.slane %v1758, %v1765
        %v1767 = vcombine.high %v1766, %v1766
        %v1769 = vunpack.c.l.s4 1966171168
        %v1770 = vunpack.c.0.s8 %v1769
        %v1771 = vlaneseq
        %v1772 = vshrl.u32 %v1771, 7
        %v1773 = vsub.s32 %v1770, %v1772
        %v1774 = vrot.slane %v1766, %v1773
        %v1776 = vunpack.c.l.s4 1966171168
        %v1777 = vunpack.c.0.s8 %v1776
        %v1778 = vlaneseq
        %v1779 = vshrl.u32 %v1778, 7
        %v1780 = vsub.s32 %v1777, %v1779
        %v1781 = vrot.slane %v1767, %v1780
        %v1782 = vcombine.high %v1774, %v1774
        %v1783 = vcombine.high %v1781, %v1781
        %v1785 = vpack.i.b16 %v1774, %v1774
        %v1787 = vlaneseq
        %v1788 = vshrl.u32 %v1787, 7
        %v1789 = vsub.s32 0, %v1788
        %v1790 = vrot.slane %v1785, %v1789
        %v1792 = vpack.i.b16 %v1781, %v1781
        %v1794 = vlaneseq
        %v1795 = vshrl.u32 %v1794, 7
        %v1796 = vsub.s32 0, %v1795
        %v1797 = vrot.slane %v1792, %v1796
        %v1799 = vpack.i.b16 %v1782, %v1782
        %v1801 = vlaneseq
        %v1802 = vshrl.u32 %v1801, 7
        %v1803 = vsub.s32 0, %v1802
        %v1804 = vrot.slane %v1799, %v1803
        %v1806 = vpack.i.b16 %v1783, %v1783
        %v1808 = vlaneseq
        %v1809 = vshrl.u32 %v1808, 7
        %v1810 = vsub.s32 0, %v1809
        %v1811 = vrot.slane %v1806, %v1810
        %v1812 = vadd.bf16 %v1754, %v1790
        %v1813 = vadd.bf16 %v1755, %v1797
        %v1814 = vadd.bf16 %v1756, %v1804
        %v1815 = vadd.bf16 %v1757, %v1811
        %vm1816 = vcmp.gt.bf16.partialorder %v1812, 0
        %vm1817 = vcmp.gt.bf16.partialorder %v1813, 0
        %vm1818 = vcmp.gt.bf16.partialorder %v1814, 0
        %vm1819 = vcmp.gt.bf16.partialorder %v1815, 0
        %v1820 = vld [vmem:[%s16] sm:$0xf]
        %v1823 = vunpack.c.l.s4 1966171168
        %v1824 = vunpack.c.0.s8 %v1823
        %v1825 = vlaneseq
        %v1826 = vshrl.u32 %v1825, 7
        %v1827 = vsub.s32 %v1824, %v1826
        %v1828 = vrot.slane %v1820, %v1827
        %v1829 = vcombine.high %v1828, %v1828
        %v1831 = vunpack.c.l.s4 1966171168
        %v1832 = vunpack.c.0.s8 %v1831
        %v1833 = vlaneseq
        %v1834 = vshrl.u32 %v1833, 7
        %v1835 = vsub.s32 %v1832, %v1834
        %v1836 = vrot.slane %v1828, %v1835
        %v1838 = vunpack.c.l.s4 1966171168
        %v1839 = vunpack.c.0.s8 %v1838
        %v1840 = vlaneseq
        %v1841 = vshrl.u32 %v1840, 7
        %v1842 = vsub.s32 %v1839, %v1841
        %v1843 = vrot.slane %v1829, %v1842
        %v1844 = vcombine.high %v1836, %v1836
        %v1845 = vcombine.high %v1843, %v1843
        %v1847 = vpack.i.b16 %v1836, %v1836
        %v1849 = vlaneseq
        %v1850 = vshrl.u32 %v1849, 7
        %v1851 = vsub.s32 0, %v1850
        %v1852 = vrot.slane %v1847, %v1851
        %v1854 = vpack.i.b16 %v1843, %v1843
        %v1856 = vlaneseq
        %v1857 = vshrl.u32 %v1856, 7
        %v1858 = vsub.s32 0, %v1857
        %v1859 = vrot.slane %v1854, %v1858
        %v1861 = vpack.i.b16 %v1844, %v1844
        %v1863 = vlaneseq
        %v1864 = vshrl.u32 %v1863, 7
        %v1865 = vsub.s32 0, %v1864
        %v1866 = vrot.slane %v1861, %v1865
        %v1868 = vpack.i.b16 %v1845, %v1845
        %v1870 = vlaneseq
        %v1871 = vshrl.u32 %v1870, 7
        %v1872 = vsub.s32 0, %v1871
        %v1873 = vrot.slane %v1868, %v1872
        %v1874 = vmul.bf16 %v1852, %v1812
        %v1875 = vmul.bf16 %v1859, %v1813
        %v1876 = vmul.bf16 %v1866, %v1814
        %v1877 = vmul.bf16 %v1873, %v1815
        %v1878 = vsel %vm1816, %v1812, %v1874
        %v1879 = vsel %vm1817, %v1813, %v1875
        %v1880 = vsel %vm1818, %v1814, %v1876
        %v1881 = vsel %vm1819, %v1815, %v1877
        %v1882 = vld [vmem:[#allocation18] sm:$0xf]
        %v1883 = vld [vmem:[#allocation18 + $0x4] sm:$0xf]
        %v1884 = vld [vmem:[#allocation18 + $0x8] sm:$0xf]
        %v1885 = vld [vmem:[#allocation18 + $0xc] sm:$0xf]
        %v1886 = vld [vmem:[#allocation18 + $0x10] sm:$0xf]
        %v1887 = vld [vmem:[#allocation18 + $0x14] sm:$0xf]
        %v1888 = vld [vmem:[#allocation18 + $0x18] sm:$0xf]
        %v1889 = vld [vmem:[#allocation18 + $0x1c] sm:$0xf]
        %v1890 = vld [vmem:[#allocation18 + $0x20] sm:$0xf]
        %v1891 = vld [vmem:[#allocation18 + $0x24] sm:$0xf]
        %v1892 = vld [vmem:[#allocation18 + $0x28] sm:$0xf]
        %v1893 = vld [vmem:[#allocation18 + $0x2c] sm:$0xf]
        %v1894 = vld [vmem:[#allocation18 + $0x30] sm:$0xf]
        %v1895 = vld [vmem:[#allocation18 + $0x34] sm:$0xf]
        %v1896 = vld [vmem:[#allocation18 + $0x38] sm:$0xf]
        %v1897 = vld [vmem:[#allocation18 + $0x3c] sm:$0xf]
        %v1898 = vld [vmem:[#allocation18 + $0x40] sm:$0xf]
        %v1899 = vld [vmem:[#allocation18 + $0x44] sm:$0xf]
        %v1900 = vld [vmem:[#allocation18 + $0x48] sm:$0xf]
        %v1901 = vld [vmem:[#allocation18 + $0x4c] sm:$0xf]
        %v1902 = vld [vmem:[#allocation18 + $0x50] sm:$0xf]
        %v1903 = vld [vmem:[#allocation18 + $0x54] sm:$0xf]
        %v1904 = vld [vmem:[#allocation18 + $0x58] sm:$0xf]
        %v1905 = vld [vmem:[#allocation18 + $0x5c] sm:$0xf]
        %v1906 = vld [vmem:[#allocation18 + $0x60] sm:$0xf]
        %v1907 = vld [vmem:[#allocation18 + $0x64] sm:$0xf]
        %v1908 = vld [vmem:[#allocation18 + $0x68] sm:$0xf]
        %v1909 = vld [vmem:[#allocation18 + $0x6c] sm:$0xf]
        %v1910 = vld [vmem:[#allocation18 + $0x70] sm:$0xf]
        %v1911 = vld [vmem:[#allocation18 + $0x74] sm:$0xf]
        %v1912 = vld [vmem:[#allocation18 + $0x78] sm:$0xf]
        %v1913 = vld [vmem:[#allocation18 + $0x7c] sm:$0xf]
        %v1914 = vld [vmem:[#allocation18 + $0x80] sm:$0xf]
        %v1915 = vld [vmem:[#allocation18 + $0x84] sm:$0xf]
        %v1916 = vld [vmem:[#allocation18 + $0x88] sm:$0xf]
        %v1917 = vld [vmem:[#allocation18 + $0x8c] sm:$0xf]
        %v1918 = vld [vmem:[#allocation18 + $0x90] sm:$0xf]
        %v1919 = vld [vmem:[#allocation18 + $0x94] sm:$0xf]
        %v1920 = vld [vmem:[#allocation18 + $0x98] sm:$0xf]
        %v1921 = vld [vmem:[#allocation18 + $0x9c] sm:$0xf]
        %v1922 = vld [vmem:[#allocation18 + $0xa0] sm:$0xf]
        %v1923 = vld [vmem:[#allocation18 + $0xa4] sm:$0xf]
        %v1924 = vld [vmem:[#allocation18 + $0xa8] sm:$0xf]
        %v1925 = vld [vmem:[#allocation18 + $0xac] sm:$0xf]
        %v1926 = vld [vmem:[#allocation18 + $0xb0] sm:$0xf]
        %v1927 = vld [vmem:[#allocation18 + $0xb4] sm:$0xf]
        %v1928 = vld [vmem:[#allocation18 + $0xb8] sm:$0xf]
        %v1929 = vld [vmem:[#allocation18 + $0xbc] sm:$0xf]
        %v1930 = vld [vmem:[#allocation18 + $0xc0] sm:$0xf]
        %v1931 = vld [vmem:[#allocation18 + $0xc4] sm:$0xf]
        %v1932 = vld [vmem:[#allocation18 + $0xc8] sm:$0xf]
        %v1933 = vld [vmem:[#allocation18 + $0xcc] sm:$0xf]
        %v1934 = vld [vmem:[#allocation18 + $0xd0] sm:$0xf]
        %v1935 = vld [vmem:[#allocation18 + $0xd4] sm:$0xf]
        %v1936 = vld [vmem:[#allocation18 + $0xd8] sm:$0xf]
        %v1937 = vld [vmem:[#allocation18 + $0xdc] sm:$0xf]
        %v1938 = vld [vmem:[#allocation18 + $0xe0] sm:$0xf]
        %v1939 = vld [vmem:[#allocation18 + $0xe4] sm:$0xf]
        %v1940 = vld [vmem:[#allocation18 + $0xe8] sm:$0xf]
        %v1941 = vld [vmem:[#allocation18 + $0xec] sm:$0xf]
        %v1942 = vld [vmem:[#allocation18 + $0xf0] sm:$0xf]
        %v1943 = vld [vmem:[#allocation18 + $0xf4] sm:$0xf]
        %v1944 = vld [vmem:[#allocation18 + $0xf8] sm:$0xf]
        %v1945 = vld [vmem:[#allocation18 + $0xfc] sm:$0xf]
        %v2010 = vunpack.c.l.b16 %v1882
        %v2011 = vunpack.c.l.b16 %v1883
        %v2012 = vunpack.c.l.b16 %v1884
        %v2013 = vunpack.c.l.b16 %v1885
        %v2014 = vunpack.c.l.b16 %v1886
        %v2015 = vunpack.c.l.b16 %v1887
        %v2016 = vunpack.c.l.b16 %v1888
        %v2017 = vunpack.c.l.b16 %v1889
        %v2018 = vunpack.c.l.b16 %v1890
        %v2019 = vunpack.c.l.b16 %v1891
        %v2020 = vunpack.c.l.b16 %v1892
        %v2021 = vunpack.c.l.b16 %v1893
        %v2022 = vunpack.c.l.b16 %v1894
        %v2023 = vunpack.c.l.b16 %v1895
        %v2024 = vunpack.c.l.b16 %v1896
        %v2025 = vunpack.c.l.b16 %v1897
        %v2026 = vunpack.c.l.b16 %v1898
        %v2027 = vunpack.c.l.b16 %v1899
        %v2028 = vunpack.c.l.b16 %v1900
        %v2029 = vunpack.c.l.b16 %v1901
        %v2030 = vunpack.c.l.b16 %v1902
        %v2031 = vunpack.c.l.b16 %v1903
        %v2032 = vunpack.c.l.b16 %v1904
        %v2033 = vunpack.c.l.b16 %v1905
        %v2034 = vunpack.c.l.b16 %v1906
        %v2035 = vunpack.c.l.b16 %v1907
        %v2036 = vunpack.c.l.b16 %v1908
        %v2037 = vunpack.c.l.b16 %v1909
        %v2038 = vunpack.c.l.b16 %v1910
        %v2039 = vunpack.c.l.b16 %v1911
        %v2040 = vunpack.c.l.b16 %v1912
        %v2041 = vunpack.c.l.b16 %v1913
        %v2042 = vunpack.c.l.b16 %v1914
        %v2043 = vunpack.c.l.b16 %v1915
        %v2044 = vunpack.c.l.b16 %v1916
        %v2045 = vunpack.c.l.b16 %v1917
        %v2046 = vunpack.c.l.b16 %v1918
        %v2047 = vunpack.c.l.b16 %v1919
        %v2048 = vunpack.c.l.b16 %v1920
        %v2049 = vunpack.c.l.b16 %v1921
        %v2050 = vunpack.c.l.b16 %v1922
        %v2051 = vunpack.c.l.b16 %v1923
        %v2052 = vunpack.c.l.b16 %v1924
        %v2053 = vunpack.c.l.b16 %v1925
        %v2054 = vunpack.c.l.b16 %v1926
        %v2055 = vunpack.c.l.b16 %v1927
        %v2056 = vunpack.c.l.b16 %v1928
        %v2057 = vunpack.c.l.b16 %v1929
        %v2058 = vunpack.c.l.b16 %v1930
        %v2059 = vunpack.c.l.b16 %v1931
        %v2060 = vunpack.c.l.b16 %v1932
        %v2061 = vunpack.c.l.b16 %v1933
        %v2062 = vunpack.c.l.b16 %v1934
        %v2063 = vunpack.c.l.b16 %v1935
        %v2064 = vunpack.c.l.b16 %v1936
        %v2065 = vunpack.c.l.b16 %v1937
        %v2066 = vunpack.c.l.b16 %v1938
        %v2067 = vunpack.c.l.b16 %v1939
        %v2068 = vunpack.c.l.b16 %v1940
        %v2069 = vunpack.c.l.b16 %v1941
        %v2070 = vunpack.c.l.b16 %v1942
        %v2071 = vunpack.c.l.b16 %v1943
        %v2072 = vunpack.c.l.b16 %v1944
        %v2073 = vunpack.c.l.b16 %v1945
        %v2074 = vpack.c.b16 %v2011, %v2010
        %v2075 = vpack.c.b16 %v2013, %v2012
        %v2076 = vpack.c.b16 %v2015, %v2014
        %v2077 = vpack.c.b16 %v2017, %v2016
        %v2078 = vpack.c.b16 %v2019, %v2018
        %v2079 = vpack.c.b16 %v2021, %v2020
        %v2080 = vpack.c.b16 %v2023, %v2022
        %v2081 = vpack.c.b16 %v2025, %v2024
        %v2082 = vpack.c.b16 %v2027, %v2026
        %v2083 = vpack.c.b16 %v2029, %v2028
        %v2084 = vpack.c.b16 %v2031, %v2030
        %v2085 = vpack.c.b16 %v2033, %v2032
        %v2086 = vpack.c.b16 %v2035, %v2034
        %v2087 = vpack.c.b16 %v2037, %v2036
        %v2088 = vpack.c.b16 %v2039, %v2038
        %v2089 = vpack.c.b16 %v2041, %v2040
        %v2090 = vpack.c.b16 %v2043, %v2042
        %v2091 = vpack.c.b16 %v2045, %v2044
        %v2092 = vpack.c.b16 %v2047, %v2046
        %v2093 = vpack.c.b16 %v2049, %v2048
        %v2094 = vpack.c.b16 %v2051, %v2050
        %v2095 = vpack.c.b16 %v2053, %v2052
        %v2096 = vpack.c.b16 %v2055, %v2054
        %v2097 = vpack.c.b16 %v2057, %v2056
        %v2098 = vpack.c.b16 %v2059, %v2058
        %v2099 = vpack.c.b16 %v2061, %v2060
        %v2100 = vpack.c.b16 %v2063, %v2062
        %v2101 = vpack.c.b16 %v2065, %v2064
        %v2102 = vpack.c.b16 %v2067, %v2066
        %v2103 = vpack.c.b16 %v2069, %v2068
        %v2104 = vpack.c.b16 %v2071, %v2070
        %v2105 = vpack.c.b16 %v2073, %v2072
        %2138 = vmatprep.subr.bf16.mxu0 0
        %2139 = vmatpush1.bf16.msra.mxu0 %v2081
        %2140 = vmatprep.subr.bf16.mxu0 0
        %2141 = vmatpush1.bf16.msra.mxu0 %v2080
        %2142 = vmatprep.subr.bf16.mxu0 0
        %2143 = vmatpush1.bf16.msra.mxu0 %v2079
        %2144 = vmatprep.subr.bf16.mxu0 0
        %2145 = vmatpush1.bf16.msra.mxu0 %v2078
        %2146 = vmatprep.subr.bf16.mxu0 0
        %2147 = vmatpush1.bf16.msra.mxu0 %v2077
        %2148 = vmatprep.subr.bf16.mxu0 0
        %2149 = vmatpush1.bf16.msra.mxu0 %v2076
        %2150 = vmatprep.subr.bf16.mxu0 0
        %2151 = vmatpush1.bf16.msra.mxu0 %v2075
        %2152 = vmatprep.subr.bf16.mxu0 0
        %2153 = vmatpush1.bf16.msra.mxu0 %v2074
        %2154 = vmatprep.subr.bf16.mxu0 0
        %2155 = vmatpush2.bf16.msra.mxu0 %v2089
        %2156 = vmatprep.subr.bf16.mxu0 0
        %2157 = vmatpush2.bf16.msra.mxu0 %v2088
        %2158 = vmatprep.subr.bf16.mxu0 0
        %2159 = vmatpush2.bf16.msra.mxu0 %v2087
        %2160 = vmatprep.subr.bf16.mxu0 0
        %2161 = vmatpush2.bf16.msra.mxu0 %v2086
        %2162 = vmatprep.subr.bf16.mxu0 0
        %2163 = vmatpush2.bf16.msra.mxu0 %v2085
        %2164 = vmatprep.subr.bf16.mxu0 0
        %2165 = vmatpush2.bf16.msra.mxu0 %v2084
        %2166 = vmatprep.subr.bf16.mxu0 0
        %2167 = vmatpush2.bf16.msra.mxu0 %v2083
        %2168 = vmatprep.subr.bf16.mxu0 0
        %2169 = vmatpush2.bf16.msra.mxu0 %v2082
        %2170 = vmatprep.mubr.bf16.mxu0 %v1879
        %2171 = vmatmul.mubr.bf16.gmra.mxu0 %v1878
        %v2172 = vpop.f32.mrf.mxu0
        %v2173 = vadd.f32 0.0, %v2172
        %v2174 = vpop.f32.mrf.mxu0
        %v2175 = vpop.f32.mrf.mxu0
        %v2176 = vadd.f32 0.0, %v2175
        %v2177 = vpop.f32.mrf.mxu0
        %2178 = vdwg.mxu0
        %2179 = vmatprep.subr.bf16.mxu0 0
        %2180 = vmatpush1.bf16.msra.mxu0 %v2097
        %2181 = vmatprep.subr.bf16.mxu0 0
        %2182 = vmatpush1.bf16.msra.mxu0 %v2096
        %2183 = vmatprep.subr.bf16.mxu0 0
        %2184 = vmatpush1.bf16.msra.mxu0 %v2095
        %2185 = vmatprep.subr.bf16.mxu0 0
        %2186 = vmatpush1.bf16.msra.mxu0 %v2094
        %2187 = vmatprep.subr.bf16.mxu0 0
        %2188 = vmatpush1.bf16.msra.mxu0 %v2093
        %2189 = vmatprep.subr.bf16.mxu0 0
        %2190 = vmatpush1.bf16.msra.mxu0 %v2092
        %2191 = vmatprep.subr.bf16.mxu0 0
        %2192 = vmatpush1.bf16.msra.mxu0 %v2091
        %2193 = vmatprep.subr.bf16.mxu0 0
        %2194 = vmatpush1.bf16.msra.mxu0 %v2090
        %2195 = vmatprep.subr.bf16.mxu0 0
        %2196 = vmatpush2.bf16.msra.mxu0 %v2105
        %2197 = vmatprep.subr.bf16.mxu0 0
        %2198 = vmatpush2.bf16.msra.mxu0 %v2104
        %2199 = vmatprep.subr.bf16.mxu0 0
        %2200 = vmatpush2.bf16.msra.mxu0 %v2103
        %2201 = vmatprep.subr.bf16.mxu0 0
        %2202 = vmatpush2.bf16.msra.mxu0 %v2102
        %2203 = vmatprep.subr.bf16.mxu0 0
        %2204 = vmatpush2.bf16.msra.mxu0 %v2101
        %2205 = vmatprep.subr.bf16.mxu0 0
        %2206 = vmatpush2.bf16.msra.mxu0 %v2100
        %2207 = vmatprep.subr.bf16.mxu0 0
        %2208 = vmatpush2.bf16.msra.mxu0 %v2099
        %2209 = vmatprep.subr.bf16.mxu0 0
        %2210 = vmatpush2.bf16.msra.mxu0 %v2098
        %2211 = vmatprep.mubr.bf16.mxu0 %v1881
        %2212 = vmatmul.mubr.bf16.gmra.mxu0 %v1880
        %v2213 = vpop.f32.mrf.mxu0
        %v2214 = vadd.f32 %v2173, %v2213
        %v2215 = vpop.f32.mrf.mxu0
        %v2216 = vpop.f32.mrf.mxu0
        %v2217 = vadd.f32 %v2176, %v2216
        %v2218 = vpop.f32.mrf.mxu0
        %2219 = vdwg.mxu0
        %v2220 = vld [vmem:[#allocation3] sm:$0x1]
        %v2222 = vlaneseq
        %v2223 = vshrl.u32 %v2222, 7
        %v2224 = vsub.s32 0, %v2223
        %v2225 = vrot.slane %v2220, %v2224
        %v2227 = vadd.f32 %v2214, %v2225
        %v2228 = vadd.f32 %v2217, %v2225
        %vm2229 = vcmp.gt.f32.partialorder %v2227, 20.0
        %vm2230 = vcmp.gt.f32.partialorder %v2228, 20.0
        %v2231 = vmin.f32 %v2227, 20.0
        %v2232 = vmin.f32 %v2228, 20.0
        %v2233 = vmul.f32 %v2231, 1.442695
        %v2234 = vpow.pop %v2233
        %v2235 = vmul.f32 %v2232, 1.442695
        %v2236 = vpow.pop %v2235
        %v2237 = vadd.f32 %v2234, 1.0
        %v2238 = vlog2.pop %v2237
        %v2239 = vmul.f32 %v2238, 0.6931472
        %v2240 = vmul.f32 -0.5, %v2234
        %v2241 = vadd.f32 %v2240, 1.0
        %v2242 = vmul.f32 %v2241, %v2234
        %v2243 = vand.u32 2147483647, %v2234
        %vm2244 = vcmp.lt.f32.partialorder %v2243, 0.0004427343
        %v2245 = vsel %vm2244, %v2242, %v2239
        %v2246 = vadd.f32 %v2236, 1.0
        %v2247 = vlog2.pop %v2246
        %v2248 = vmul.f32 %v2247, 0.6931472
        %v2249 = vmul.f32 -0.5, %v2236
        %v2250 = vadd.f32 %v2249, 1.0
        %v2251 = vmul.f32 %v2250, %v2236
        %v2252 = vand.u32 2147483647, %v2236
        %vm2253 = vcmp.lt.f32.partialorder %v2252, 0.0004427343
        %v2254 = vsel %vm2253, %v2251, %v2248
        %v2255 = vsel %vm2229, %v2227, %v2245
        %v2256 = vsel %vm2230, %v2228, %v2254
        %s2257 = smul.u32 %s41, 16
        %v2258 = vlaneseq
        %v2259 = vshrl.u32 %v2258, 7
        %v2260 = vadd.s32 %v2259, 8
        %v2261 = vstv %s2257
        %v2262 = vadd.s32 %v2261, %v2259
        %v2263 = vadd.s32 %v2261, %v2260
        %s2264 = sld [smem:[#allocation2]]
        %v2265 = vstv %s2264
        %vm2266 = vcmp.lt.s32.totalorder %v2262, %v2265
        %vm2267 = vcmp.lt.s32.totalorder %v2263, %v2265
        %v2268 = vsel %vm2266, %v2255, 0.0
        %v2269 = vsel %vm2267, %v2256, 0.0
        %vm2270 = vcmask 7168
        %v2271 = vsel %vm2270, %v2268, 0.0
        %v2272 = vsel %vm2270, %v2269, 0.0
        %v2273 = vadd.f32 %v2271, %v2272
        %2274 = vadd.xlane.f32.xlu0 %v2273
        %v2275 = vpop.xlane.xlu0 %2274
        %v2276 = vrot.slane %v2275, 4
        %v2277 = vadd.f32 %v2275, %v2276
        %v2278 = vrot.slane %v2277, 2
        %v2279 = vadd.f32 %v2277, %v2278
        %v2280 = vrot.slane %v2279, 1
        %v2281 = vadd.f32 %v2279, %v2280
        %s2282 = vtos %v2281
        %v2283 = vlaneseq
        %v2284 = vand.u32 %v2283, 127
        %vm2285 = vcmp.eq.s32.totalorder %v2284, 0
        %v2286 = vstv %s2282
        %v2287 = vsel %vm2285, %v2286, 0.0
        %2288 = vst [vmem:[%s717] sm:$0x1] %v2287
        %s2289 = sand.u32 %s453, 1
        %s2290 = scalar_lea.sflag [#allocation6], %s2289
        %s2291 = sand.u32 %s453, 1
        %s2292 = scalar_lea.vmem [#allocation19], %s2291
        // Predicated region
        $region133: #{tpu_custom_call.1} parent=95 // pred_check
          %p2293 = pneg %p463
        $region134: #{tpu_custom_call.1} parent=95 // pred_check_branch
          %2295 = sbr.rel (%p2293) target = $region136
        $region135: #{tpu_custom_call.1} parent=95 // pred_region
          %s2297 = ssub.s32 16, 16
          %2298 = vsyncadd %s2290, %s2297
          %s2299 = smul.addr %s41, 16
          %s2300 = scalar_lea.hbm %s19, %s2299
          %s2302 = sshll.u32 %s2292, 4
          %s2303 = int_to_ptr.vmem [resolvable:$true] %s2302
          %2305 = dma.vmem_to_hbm [thread:$0]  %s2303, 16, %s2300, %s2290
        $region136: #{tpu_custom_call.1} parent=95 // pred_fallthru
          _
      $region96: #{tpu_custom_call.1} parent=5 // pred_fallthru
        _
      %p2306 = scmp.le.s32.totalorder 2, %s36
      // Predicated region
      $region137: #{tpu_custom_call.1} parent=5 // pred_check
        %p2307 = pneg %p2306
      $region138: #{tpu_custom_call.1} parent=5 // pred_check_branch
        %2309 = sbr.rel (%p2307) target = $region140
      $region139: #{tpu_custom_call.1} parent=5 // pred_region
        %s2310 = ssub.s32 %s36, 2
        // Predicated region
        $region141: #{tpu_custom_call.1} parent=139 // pred_check
          %p2311 = pneg %p469
        $region142: #{tpu_custom_call.1} parent=139 // pred_check_branch
          %2313 = sbr.rel (%p2311) target = $region144
        $region143: #{tpu_custom_call.1} parent=139 // pred_region
          %s2314 = sand.u32 %s454, 1
          %s2315 = scalar_lea.sflag [#allocation6], %s2314
          %s2316 = sand.u32 %s454, 1
          %s2317 = scalar_lea.vmem [#allocation19], %s2316
          %2318 = dma.done %s2315, 16
        $region144: #{tpu_custom_call.1} parent=139 // pred_fallthru
          _
      $region140: #{tpu_custom_call.1} parent=5 // pred_fallthru
        _
    $region6: #{tpu_custom_call.1} parent=1 // loop_footer
      %s40 = sadd.s32 1, %s36
    $region7: #{tpu_custom_call.1} parent=1 // loop_footer_branch
      %35 = sbr.rel target = $region3
    $region8: #{tpu_custom_call.1} parent=1 // loop_exit
      _
    %2319 = vsyncpa [#allocation5], 1
    %s2320 = scalar_lea.sflag [#allocation5], 1
    %2321 = vsyncpa %s2320, 1
    %2322 = vsyncpa [#allocation8], 1
    %2323 = vsyncpa [#allocation11], 1
    %2324 = vsyncpa [#allocation14], 1
    %2325 = vsyncpa [#allocation17], 1
    %2326 = vsyncpa [#allocation6], 1
    %s2327 = scalar_lea.sflag [#allocation6], 1
    %2328 = vsyncpa %s2327, 1

</llo_original>
